<compile_context>
chip_gen: v6e
topology: v6e:2x2x1
jax: 0.10.0
libtpu: 0.0.40
codegen_flags: <defaults>
</compile_context>

<pallas_src>
import functools

import numpy as np
import jax
import jax.numpy as jnp
from jax.experimental import pallas as pl
from jax.experimental.pallas import tpu as pltpu


# ----------------------------------------------------------------------------
# Kernel 1 (one-shot): hoisted side-graph contribution
#   side_m = (mmGraph + mmGraph1) @ emb_mm      (M, D)
#   side_a = (aaGraph + aaGraph1) @ emb_aa      (A, D)
# Both are layer- and graph-invariant in the reference forward_gcn.
# ----------------------------------------------------------------------------
def _side_bias_kernel(mm_g_ref, mm_g1_ref, mm_e_ref, aa_g_ref, aa_g1_ref,
                      aa_e_ref, side_m_ref, side_a_ref):
    side_m_ref[...] = jnp.dot(mm_g_ref[...] + mm_g1_ref[...], mm_e_ref[...],
                              preferred_element_type=jnp.float32)
    side_a_ref[...] = jnp.dot(aa_g_ref[...] + aa_g1_ref[...], aa_e_ref[...],
                              preferred_element_type=jnp.float32)


def side_bias(mm_g, mm_g1, emb_mm, aa_g, aa_g1, emb_aa):
    M, D = emb_mm.shape
    A = emb_aa.shape[0]
    vmem = pl.BlockSpec(memory_space=pltpu.MemorySpace.VMEM)
    return pl.pallas_call(
        _side_bias_kernel,
        out_shape=(jax.ShapeDtypeStruct((M, D), jnp.float32),
                   jax.ShapeDtypeStruct((A, D), jnp.float32)),
        in_specs=[vmem] * 6,
        out_specs=(vmem, vmem),
    )(mm_g, mm_g1, emb_mm, aa_g, aa_g1, emb_aa)


# ----------------------------------------------------------------------------
# Kernel 2: one LightGCN propagation layer, fused over the 3 graphs.
# Grid axis g in {Graph, diffGraph, diffGraph1}, marked "parallel".
#   prop_m = R   @ emb_api      (M, D)
#   prop_a = R^T @ emb_mashup   (A, D)
#   out    = (hoisted side bias + prop) / 3
# ----------------------------------------------------------------------------
def _gcn_layer_kernel(r_ref, rt_ref, em_ref, ea_ref, sm_ref, sa_ref,
                      om_ref, oa_ref):
    third = jnp.float32(1.0 / 3.0)
    prop_m = jnp.dot(r_ref[...], ea_ref[...],
                     preferred_element_type=jnp.float32)          # (M, D)
    prop_a = jnp.dot(rt_ref[...], em_ref[...],
                     preferred_element_type=jnp.float32)          # (A, D)
    om_ref[...] = (sm_ref[...] + prop_m) * third
    oa_ref[...] = (sa_ref[...] + prop_a) * third


def gcn_layer_fused(r_bf16, rt_bf16, emb_m, emb_a, side_m, side_a):
    G, M, A = r_bf16.shape
    D = emb_m.shape[-1]
    return pl.pallas_call(
        _gcn_layer_kernel,
        out_shape=(jax.ShapeDtypeStruct((G, M, D), jnp.float32),
                   jax.ShapeDtypeStruct((G, A, D), jnp.float32)),
        grid=(G,),
        in_specs=[
            pl.BlockSpec((None, M, A), lambda g: (g, 0, 0)),   # R   (bf16)
            pl.BlockSpec((None, A, M), lambda g: (g, 0, 0)),   # R^T (bf16)
            pl.BlockSpec((None, M, D), lambda g: (g, 0, 0)),   # mashup emb
            pl.BlockSpec((None, A, D), lambda g: (g, 0, 0)),   # api emb
            pl.BlockSpec((M, D), lambda g: (0, 0)),            # hoisted bias
            pl.BlockSpec((A, D), lambda g: (0, 0)),
        ],
        out_specs=(pl.BlockSpec((None, M, D), lambda g: (g, 0, 0)),
                   pl.BlockSpec((None, A, D), lambda g: (g, 0, 0))),
        compiler_params=pltpu.CompilerParams(
            dimension_semantics=("parallel",),
            vmem_limit_bytes=64 * 1024 * 1024),
    )(r_bf16, rt_bf16,
      emb_m.astype(jnp.bfloat16), emb_a.astype(jnp.bfloat16),
      side_m, side_a)


def forward_gcn_fused(r_bf16, rt_bf16, emb_mashup, emb_api, side_m, side_a,
                      n_layers):
    """LightGCN multi-layer propagation for the 3 stacked graphs at once."""
    G = r_bf16.shape[0]
    cur_m = jnp.broadcast_to(emb_mashup[None], (G,) + emb_mashup.shape)
    cur_a = jnp.broadcast_to(emb_api[None], (G,) + emb_api.shape)
    acc_m, acc_a = cur_m, cur_a                    # layer-0 term of the mean
    for _ in range(n_layers):
        cur_m, cur_a = gcn_layer_fused(r_bf16, rt_bf16, cur_m, cur_a,
                                       side_m, side_a)
        acc_m = acc_m + cur_m
        acc_a = acc_a + cur_a
    inv = 1.0 / float(n_layers + 1)
    return acc_m * inv, acc_a * inv                # (G, M, D), (G, A, D)


# ----------------------------------------------------------------------------
# Kernel 3: fused BPR (softplus) loss + L2 reg loss over the 3 graphs.
# Inputs are (3, B, D); outputs are the SUMS over the 3 graphs (as in forward).
# ----------------------------------------------------------------------------
def _bpr_kernel(anc_ref, pos_ref, neg_ref, loss_ref, reg_ref):
    anc = anc_ref[...]
    pos = pos_ref[...]
    neg = neg_ref[...]
    B = anc.shape[1]

    diff = jnp.sum(anc * (neg - pos), axis=-1, keepdims=True)    # (3, B, 1)
    # stable softplus(x) = max(x, 0) + log(1 + exp(-|x|))
    sp = jnp.maximum(diff, 0.0) + jnp.log(1.0 + jnp.exp(-jnp.abs(diff)))
    loss_ref[0, 0] = jnp.sum(sp) / float(B)        # = mean per graph, summed

    reg = 0.5 * (jnp.sum(anc * anc) + jnp.sum(pos * pos) +
                 jnp.sum(neg * neg)) / float(B)
    reg_ref[0, 0] = reg


def bpr_losses_fused(anc, pos, neg):
    vmem = pl.BlockSpec(memory_space=pltpu.MemorySpace.VMEM)
    smem = pl.BlockSpec(memory_space=pltpu.MemorySpace.SMEM)
    loss, reg = pl.pallas_call(
        _bpr_kernel,
        out_shape=(jax.ShapeDtypeStruct((1, 1), jnp.float32),
                   jax.ShapeDtypeStruct((1, 1), jnp.float32)),
        in_specs=[vmem] * 3,
        out_specs=(smem, smem),
    )(anc, pos, neg)
    return loss[0, 0], reg[0, 0]


# ----------------------------------------------------------------------------
# Kernel 4: SSL (InfoNCE-style) loss in log-sum-exp form.
#   loss = mean_i( logsumexp_j(s_ij / t) - pos_i / t )
# ----------------------------------------------------------------------------
def _ssl_kernel(e1_ref, e2_ref, out_ref, *, temp):
    e1 = e1_ref[...]                                             # (K, D)
    e2 = e2_ref[...]
    K = e1.shape[0]
    inv_t = jnp.float32(1.0 / temp)

    pos = jnp.sum(e1 * e2, axis=-1, keepdims=True) * inv_t        # (K, 1)
    scores = jax.lax.dot_general(                                 # (K, K)
        e1, e2, (((1,), (1,)), ((), ())),
        preferred_element_type=jnp.float32) * inv_t
    m = jnp.max(scores, axis=-1, keepdims=True)                   # (K, 1)
    lse = m + jnp.log(jnp.sum(jnp.exp(scores - m), axis=-1, keepdims=True))
    out_ref[0, 0] = jnp.sum(lse - pos) / float(K)


def ssl_loss(e1, e2, temp):
    vmem = pl.BlockSpec(memory_space=pltpu.MemorySpace.VMEM)
    smem = pl.BlockSpec(memory_space=pltpu.MemorySpace.SMEM)
    out = pl.pallas_call(
        functools.partial(_ssl_kernel, temp=float(temp)),
        out_shape=jax.ShapeDtypeStruct((1, 1), jnp.float32),
        in_specs=[vmem, vmem],
        out_specs=smem,
    )(e1, e2)
    return out[0, 0]


def l2_normalize(x, eps=1e-12):
    # F.normalize(x, p=2, dim=1)
    norm = jnp.sqrt(jnp.sum(x * x, axis=1, keepdims=True))
    return x / jnp.maximum(norm, eps)


# ----------------------------------------------------------------------------
# LightGCN.forward
# ----------------------------------------------------------------------------
@functools.partial(jax.jit, static_argnames=("n_layers", "ssl_temp"))
def lightgcn_forward(params, r_graphs, side_graphs, mashups, pos_apis,
                     neg_apis, uniq_mashups, uniq_pos_apis, *,
                     n_layers, ssl_temp):
    emb_mashup, emb_api, emb_mm, emb_aa = params
    mm_g, mm_g1, aa_g, aa_g1 = side_graphs

    # Hoisted side-graph contribution (layer- & graph-invariant).
    side_m, side_a = side_bias(mm_g, mm_g1, emb_mm, aa_g, aa_g1, emb_aa)

    # bf16 MXU inputs (f32 accumulation inside the kernel). R^T precomputed
    # once so both in-kernel matmuls are canonical (no in-kernel transpose).
    r_bf16 = r_graphs.astype(jnp.bfloat16)                 # (3, M, A)
    rt_bf16 = jnp.swapaxes(r_graphs, 1, 2).astype(jnp.bfloat16)  # (3, A, M)

    # TODO(synk): dataset.getDiffSparseGraph re-normalizes the diff graph from
    # sparse COO indices; here all bipartite graphs are supplied as already
    # symmetrically-normalized dense R blocks (M x A).
    mashup_embs, api_embs = forward_gcn_fused(
        r_bf16, rt_bf16, emb_mashup, emb_api, side_m, side_a, n_layers)
    # graph order along axis 0: (Graph, diffGraph, diffGraph1)

    # Fused BPR + reg losses (summed over the 3 graphs, as in the reference).
    anc = mashup_embs[:, mashups]                          # (3, B, D)
    pos = api_embs[:, pos_apis]
    neg = api_embs[:, neg_apis]
    loss, reg_loss = bpr_losses_fused(anc, pos, neg)

    # SSL between the two diffusion views (graphs 1 and 2), on unique indices.
    m1n = l2_normalize(mashup_embs[1])
    m2n = l2_normalize(mashup_embs[2])
    a1n = l2_normalize(api_embs[1])
    a2n = l2_normalize(api_embs[2])
    ssl_mashups = ssl_loss(m1n[uniq_mashups], m2n[uniq_mashups], ssl_temp)
    ssl_apis = ssl_loss(a1n[uniq_pos_apis], a2n[uniq_pos_apis], ssl_temp)

    return loss, reg_loss, ssl_mashups, ssl_apis


# ----------------------------------------------------------------------------
# deterministic synthetic setup
# ----------------------------------------------------------------------------
def sym_normalize(adj):
    deg = jnp.sum(adj, axis=1)
    d_inv_sqrt = jnp.where(deg > 0, deg ** -0.5, 0.0)
    return adj * d_inv_sqrt[:, None] * d_inv_sqrt[None, :]


def make_bipartite_r(key, n_m, n_a):
    """Normalized off-diagonal block R of the symmetric bipartite adjacency.

    Equivalent to sym-normalizing the full (M+A, M+A) adjacency whose diagonal
    blocks are zero, then keeping only the M x A block (the zero blocks carry
    no information, so they are never materialized).
    """
    r = (jax.random.uniform(key, (n_m, n_a)) < 0.25).astype(jnp.float32)
    deg_m = jnp.sum(r, axis=1)
    deg_a = jnp.sum(r, axis=0)
    dm = jnp.where(deg_m > 0, deg_m ** -0.5, 0.0)
    da = jnp.where(deg_a > 0, deg_a ** -0.5, 0.0)
    return r * dm[:, None] * da[None, :]


def make_square_graph(key, n):
    a = (jax.random.uniform(key, (n, n)) < 0.25).astype(jnp.float32)
    a = jnp.maximum(a, a.T)
    return sym_normalize(a)


def xavier_uniform(key, shape):
    bound = float(np.sqrt(6.0 / (shape[0] + shape[1])))
    return jax.random.uniform(key, shape, jnp.float32, -bound, bound)


if __name__ == "__main__":
    n_mashups, n_apis = 24, 40          # multiples of 8 for clean sublane tiling
    latent_dim = 32                     # args.recdim
    n_layers = 2                        # args.layer
    batch = 8                           # len(mashups)
    ssl_temp = 0.2                      # args.ssl_temp

    key = jax.random.PRNGKey(0)
    ks = jax.random.split(key, 14)

    emb_mashup = xavier_uniform(ks[0], (n_mashups, latent_dim))
    emb_api = xavier_uniform(ks[1], (n_apis, latent_dim))
    emb_mm = xavier_uniform(ks[2], (n_mashups, latent_dim))
    emb_aa = xavier_uniform(ks[3], (n_apis, latent_dim))
    params = (emb_mashup, emb_api, emb_mm, emb_aa)

    # Bipartite graphs stored as normalized M x A blocks, stacked over
    # (Graph, diffGraph, diffGraph1).
    r_graph = make_bipartite_r(ks[4], n_mashups, n_apis)
    r_diff = make_bipartite_r(ks[5], n_mashups, n_apis)
    r_diff1 = make_bipartite_r(ks[6], n_mashups, n_apis)
    r_graphs = jnp.stack([r_graph, r_diff, r_diff1], axis=0)   # (3, M, A)

    mm_g = make_square_graph(ks[7], n_mashups)
    mm_g1 = make_square_graph(ks[8], n_mashups)
    aa_g = make_square_graph(ks[9], n_apis)
    aa_g1 = make_square_graph(ks[10], n_apis)
    side_graphs = (mm_g, mm_g1, aa_g, aa_g1)

    mashups = jax.random.randint(ks[11], (batch,), 0, n_mashups)
    pos_apis = jax.random.randint(ks[12], (batch,), 0, n_apis)
    neg_apis = jax.random.randint(ks[13], (batch,), 0, n_apis)

    # TODO(synk): torch.unique on the batch indices is precomputed once per
    # batch on the host (keeps the jitted forward free of d2h syncs); switch
    # to jnp.unique(..., size=batch) + padding for fully on-device uniqueness.
    uniq_mashups = jnp.asarray(np.unique(np.asarray(mashups)))
    uniq_pos = jnp.asarray(np.unique(np.asarray(pos_apis)))

    out = lightgcn_forward(params, r_graphs, side_graphs, mashups, pos_apis,
                           neg_apis, uniq_mashups, uniq_pos,
                           n_layers=n_layers, ssl_temp=ssl_temp)
    out = jax.block_until_ready(out)
    loss, reg_loss, ssl_m, ssl_a = [float(o) for o in out]
    assert all(np.isfinite([loss, reg_loss, ssl_m, ssl_a]))
    print("KERNEL_OK")
</pallas_src>

<mosaic_0001>
module attributes {stable_mosaic.version = 11 : i64} {
  func.func @_side_bias_kernel(%arg0: memref<24x24xf32, #tpu.memory_space<vmem>>, %arg1: memref<24x24xf32, #tpu.memory_space<vmem>>, %arg2: memref<24x32xf32, #tpu.memory_space<vmem>>, %arg3: memref<40x40xf32, #tpu.memory_space<vmem>>, %arg4: memref<40x40xf32, #tpu.memory_space<vmem>>, %arg5: memref<40x32xf32, #tpu.memory_space<vmem>>, %arg6: memref<24x32xf32, #tpu.memory_space<vmem>>, %arg7: memref<40x32xf32, #tpu.memory_space<vmem>>) attributes {dimension_semantics = [], scalar_prefetch = 0 : i64, scratch_operands = 0 : i64, tpu.core_type = #tpu.core_type<tc>} {
    %c0 = arith.constant 0 : index
    %c0_0 = arith.constant 0 : index
    %0 = vector.load %arg0[%c0, %c0_0] : memref<24x24xf32, #tpu.memory_space<vmem>>, vector<24x24xf32>
    %c0_1 = arith.constant 0 : index
    %c0_2 = arith.constant 0 : index
    %1 = vector.load %arg1[%c0_1, %c0_2] : memref<24x24xf32, #tpu.memory_space<vmem>>, vector<24x24xf32>
    %2 = arith.addf %0, %1 : vector<24x24xf32>
    %c0_3 = arith.constant 0 : index
    %c0_4 = arith.constant 0 : index
    %3 = vector.load %arg2[%c0_3, %c0_4] : memref<24x32xf32, #tpu.memory_space<vmem>>, vector<24x32xf32>
    %cst = arith.constant dense<0.000000e+00> : vector<24x32xf32>
    %4 = tpu.matmul %2, %3, %cst {dimension_numbers = #tpu.dot_dimension_numbers<[1], [0], [0], [1], [0, 0, 1, 1], [], []>} : vector<24x24xf32>, vector<24x32xf32>, vector<24x32xf32> -> vector<24x32xf32>
    %c0_5 = arith.constant 0 : index
    %c0_6 = arith.constant 0 : index
    %5 = vector.load %arg6[%c0_5, %c0_6] : memref<24x32xf32, #tpu.memory_space<vmem>>, vector<24x32xf32>
    tpu.vector_store %arg6[%c0_5, %c0_6], %4 {strides = array<i32>} : memref<24x32xf32, #tpu.memory_space<vmem>>, vector<24x32xf32>,
    %c0_7 = arith.constant 0 : index
    %c0_8 = arith.constant 0 : index
    %6 = vector.load %arg3[%c0_7, %c0_8] : memref<40x40xf32, #tpu.memory_space<vmem>>, vector<40x40xf32>
    %c0_9 = arith.constant 0 : index
    %c0_10 = arith.constant 0 : index
    %7 = vector.load %arg4[%c0_9, %c0_10] : memref<40x40xf32, #tpu.memory_space<vmem>>, vector<40x40xf32>
    %8 = arith.addf %6, %7 : vector<40x40xf32>
    %c0_11 = arith.constant 0 : index
    %c0_12 = arith.constant 0 : index
    %9 = vector.load %arg5[%c0_11, %c0_12] : memref<40x32xf32, #tpu.memory_space<vmem>>, vector<40x32xf32>
    %cst_13 = arith.constant dense<0.000000e+00> : vector<40x32xf32>
    %10 = tpu.matmul %8, %9, %cst_13 {dimension_numbers = #tpu.dot_dimension_numbers<[1], [0], [0], [1], [0, 0, 1, 1], [], []>} : vector<40x40xf32>, vector<40x32xf32>, vector<40x32xf32> -> vector<40x32xf32>
    %c0_14 = arith.constant 0 : index
    %c0_15 = arith.constant 0 : index
    %11 = vector.load %arg7[%c0_14, %c0_15] : memref<40x32xf32, #tpu.memory_space<vmem>>, vector<40x32xf32>
    tpu.vector_store %arg7[%c0_14, %c0_15], %10 {strides = array<i32>} : memref<40x32xf32, #tpu.memory_space<vmem>>, vector<40x32xf32>,
    return
  }
}

module attributes {stable_mosaic.version = 11 : i64} {
  func.func @_gcn_layer_kernel(%arg0: i32, %arg1: memref<1x24x40xbf16, #tpu.memory_space<vmem>>, %arg2: memref<1x40x24xbf16, #tpu.memory_space<vmem>>, %arg3: memref<1x24x32xbf16, #tpu.memory_space<vmem>>, %arg4: memref<1x40x32xbf16, #tpu.memory_space<vmem>>, %arg5: memref<24x32xf32, #tpu.memory_space<vmem>>, %arg6: memref<40x32xf32, #tpu.memory_space<vmem>>, %arg7: memref<1x24x32xf32, #tpu.memory_space<vmem>>, %arg8: memref<1x40x32xf32, #tpu.memory_space<vmem>>) attributes {dimension_semantics = [#tpu.dimension_semantics<parallel>], iteration_bounds = array<i64: 3>, scalar_prefetch = 0 : i64, scratch_operands = 0 : i64, tpu.core_type = #tpu.core_type<tc>, window_params = [{transform_indices = @transform_0, window_bounds = array<i64: 1, 24, 40>}, {transform_indices = @transform_1, window_bounds = array<i64: 1, 40, 24>}, {transform_indices = @transform_2, window_bounds = array<i64: 1, 24, 32>}, {transform_indices = @transform_3, window_bounds = array<i64: 1, 40, 32>}, {pipeline_mode = #tpu.pipeline_mode<synchronous>, transform_indices = @transform_4, window_bounds = array<i64: 24, 32>}, {pipeline_mode = #tpu.pipeline_mode<synchronous>, transform_indices = @transform_5, window_bounds = array<i64: 40, 32>}, {transform_indices = @transform_6, window_bounds = array<i64: 1, 24, 32>}, {transform_indices = @transform_7, window_bounds = array<i64: 1, 40, 32>}]} {
    %c0 = arith.constant 0 : index
    %c0_0 = arith.constant 0 : index
    %c0_1 = arith.constant 0 : index
    %0 = vector.load %arg1[%c0, %c0_0, %c0_1] : memref<1x24x40xbf16, #tpu.memory_space<vmem>>, vector<1x24x40xbf16>
    %1 = vector.shape_cast %0 : vector<1x24x40xbf16> to vector<24x40xbf16>
    %c0_2 = arith.constant 0 : index
    %c0_3 = arith.constant 0 : index
    %c0_4 = arith.constant 0 : index
    %2 = vector.load %arg4[%c0_2, %c0_3, %c0_4] : memref<1x40x32xbf16, #tpu.memory_space<vmem>>, vector<1x40x32xbf16>
    %3 = vector.shape_cast %2 : vector<1x40x32xbf16> to vector<40x32xbf16>
    %cst = arith.constant dense<0.000000e+00> : vector<24x32xf32>
    %4 = tpu.matmul %1, %3, %cst {dimension_numbers = #tpu.dot_dimension_numbers<[1], [0], [0], [1], [0, 0, 1, 1], [], []>} : vector<24x40xbf16>, vector<40x32xbf16>, vector<24x32xf32> -> vector<24x32xf32>
    %c0_5 = arith.constant 0 : index
    %c0_6 = arith.constant 0 : index
    %c0_7 = arith.constant 0 : index
    %5 = vector.load %arg2[%c0_5, %c0_6, %c0_7] : memref<1x40x24xbf16, #tpu.memory_space<vmem>>, vector<1x40x24xbf16>
    %6 = vector.shape_cast %5 : vector<1x40x24xbf16> to vector<40x24xbf16>
    %c0_8 = arith.constant 0 : index
    %c0_9 = arith.constant 0 : index
    %c0_10 = arith.constant 0 : index
    %7 = vector.load %arg3[%c0_8, %c0_9, %c0_10] : memref<1x24x32xbf16, #tpu.memory_space<vmem>>, vector<1x24x32xbf16>
    %8 = vector.shape_cast %7 : vector<1x24x32xbf16> to vector<24x32xbf16>
    %cst_11 = arith.constant dense<0.000000e+00> : vector<40x32xf32>
    %9 = tpu.matmul %6, %8, %cst_11 {dimension_numbers = #tpu.dot_dimension_numbers<[1], [0], [0], [1], [0, 0, 1, 1], [], []>} : vector<40x24xbf16>, vector<24x32xbf16>, vector<40x32xf32> -> vector<40x32xf32>
    %c0_12 = arith.constant 0 : index
    %c0_13 = arith.constant 0 : index
    %10 = vector.load %arg5[%c0_12, %c0_13] : memref<24x32xf32, #tpu.memory_space<vmem>>, vector<24x32xf32>
    %11 = arith.addf %10, %4 : vector<24x32xf32>
    %cst_14 = arith.constant 0.333333343 : f32
    %12 = vector.broadcast %cst_14 : f32 to vector<24x32xf32>
    %13 = arith.mulf %11, %12 : vector<24x32xf32>
    %c0_15 = arith.constant 0 : index
    %c0_16 = arith.constant 0 : index
    %c0_17 = arith.constant 0 : index
    %14 = vector.load %arg7[%c0_15, %c0_16, %c0_17] : memref<1x24x32xf32, #tpu.memory_space<vmem>>, vector<1x24x32xf32>
    %15 = vector.shape_cast %14 : vector<1x24x32xf32> to vector<24x32xf32>
    %16 = vector.shape_cast %13 : vector<24x32xf32> to vector<1x24x32xf32>
    tpu.vector_store %arg7[%c0_15, %c0_16, %c0_17], %16 {strides = array<i32>} : memref<1x24x32xf32, #tpu.memory_space<vmem>>, vector<1x24x32xf32>,
    %c0_18 = arith.constant 0 : index
    %c0_19 = arith.constant 0 : index
    %17 = vector.load %arg6[%c0_18, %c0_19] : memref<40x32xf32, #tpu.memory_space<vmem>>, vector<40x32xf32>
    %18 = arith.addf %17, %9 : vector<40x32xf32>
    %cst_20 = arith.constant 0.333333343 : f32
    %19 = vector.broadcast %cst_20 : f32 to vector<40x32xf32>
    %20 = arith.mulf %18, %19 : vector<40x32xf32>
    %c0_21 = arith.constant 0 : index
    %c0_22 = arith.constant 0 : index
    %c0_23 = arith.constant 0 : index
    %21 = vector.load %arg8[%c0_21, %c0_22, %c0_23] : memref<1x40x32xf32, #tpu.memory_space<vmem>>, vector<1x40x32xf32>
    %22 = vector.shape_cast %21 : vector<1x40x32xf32> to vector<40x32xf32>
    %23 = vector.shape_cast %20 : vector<40x32xf32> to vector<1x40x32xf32>
    tpu.vector_store %arg8[%c0_21, %c0_22, %c0_23], %23 {strides = array<i32>} : memref<1x40x32xf32, #tpu.memory_space<vmem>>, vector<1x40x32xf32>,
    return
  }
  func.func @transform_0(%arg0: i32) -> (i32, i32, i32) {
    %c0_i32 = arith.constant 0 : i32
    %c0_i32_0 = arith.constant 0 : i32
    %c0_i32_1 = arith.constant 0 : i32
    return %arg0, %c0_i32, %c0_i32_0 : i32, i32, i32
  }
  func.func @transform_1(%arg0: i32) -> (i32, i32, i32) {
    %c0_i32 = arith.constant 0 : i32
    %c0_i32_0 = arith.constant 0 : i32
    %c0_i32_1 = arith.constant 0 : i32
    return %arg0, %c0_i32, %c0_i32_0 : i32, i32, i32
  }
  func.func @transform_2(%arg0: i32) -> (i32, i32, i32) {
    %c0_i32 = arith.constant 0 : i32
    %c0_i32_0 = arith.constant 0 : i32
    %c0_i32_1 = arith.constant 0 : i32
    return %arg0, %c0_i32, %c0_i32_0 : i32, i32, i32
  }
  func.func @transform_3(%arg0: i32) -> (i32, i32, i32) {
    %c0_i32 = arith.constant 0 : i32
    %c0_i32_0 = arith.constant 0 : i32
    %c0_i32_1 = arith.constant 0 : i32
    return %arg0, %c0_i32, %c0_i32_0 : i32, i32, i32
  }
  func.func @transform_4(%arg0: i32) -> (i32, i32) {
    %c0_i32 = arith.constant 0 : i32
    %c0_i32_0 = arith.constant 0 : i32
    %c0_i32_1 = arith.constant 0 : i32
    return %c0_i32, %c0_i32_0 : i32, i32
  }
  func.func @transform_5(%arg0: i32) -> (i32, i32) {
    %c0_i32 = arith.constant 0 : i32
    %c0_i32_0 = arith.constant 0 : i32
    %c0_i32_1 = arith.constant 0 : i32
    return %c0_i32, %c0_i32_0 : i32, i32
  }
  func.func @transform_6(%arg0: i32) -> (i32, i32, i32) {
    %c0_i32 = arith.constant 0 : i32
    %c0_i32_0 = arith.constant 0 : i32
    %c0_i32_1 = arith.constant 0 : i32
    return %arg0, %c0_i32, %c0_i32_0 : i32, i32, i32
  }
  func.func @transform_7(%arg0: i32) -> (i32, i32, i32) {
    %c0_i32 = arith.constant 0 : i32
    %c0_i32_0 = arith.constant 0 : i32
    %c0_i32_1 = arith.constant 0 : i32
    return %arg0, %c0_i32, %c0_i32_0 : i32, i32, i32
  }
}

module attributes {stable_mosaic.version = 11 : i64} {
  func.func @_ssl_kernel(%arg0: memref<8x32xf32, #tpu.memory_space<vmem>>, %arg1: memref<8x32xf32, #tpu.memory_space<vmem>>, %arg2: memref<1x1xf32, #tpu.memory_space<smem>>) attributes {dimension_semantics = [], scalar_prefetch = 0 : i64, scratch_operands = 0 : i64, tpu.core_type = #tpu.core_type<tc>} {
    %c0 = arith.constant 0 : index
    %c0_0 = arith.constant 0 : index
    %0 = vector.load %arg0[%c0, %c0_0] : memref<8x32xf32, #tpu.memory_space<vmem>>, vector<8x32xf32>
    %c0_1 = arith.constant 0 : index
    %c0_2 = arith.constant 0 : index
    %1 = vector.load %arg1[%c0_1, %c0_2] : memref<8x32xf32, #tpu.memory_space<vmem>>, vector<8x32xf32>
    %2 = arith.mulf %0, %1 : vector<8x32xf32>
    %cst = arith.constant dense<0.000000e+00> : vector<8xf32>
    %3 = vector.multi_reduction <add>, %2, %cst [1] : vector<8x32xf32> to vector<8xf32>
    %4 = vector.shape_cast %3 : vector<8xf32> to vector<8x1xf32>
    %cst_3 = arith.constant 5.000000e+00 : f32
    %5 = vector.broadcast %cst_3 : f32 to vector<8x1xf32>
    %6 = arith.mulf %4, %5 : vector<8x1xf32>
    %cst_4 = arith.constant dense<0.000000e+00> : vector<8x8xf32>
    %7 = tpu.matmul %0, %1, %cst_4 {dimension_numbers = #tpu.dot_dimension_numbers<[1], [1], [0], [0], [0, 0, 1, 0], [], []>} : vector<8x32xf32>, vector<8x32xf32>, vector<8x8xf32> -> vector<8x8xf32>
    %cst_5 = arith.constant 5.000000e+00 : f32
    %8 = vector.broadcast %cst_5 : f32 to vector<8x8xf32>
    %9 = arith.mulf %7, %8 : vector<8x8xf32>
    %cst_6 = arith.constant dense<0xFF800000> : vector<8xf32>
    %10 = vector.multi_reduction <maximumf>, %9, %cst_6 [1] : vector<8x8xf32> to vector<8xf32>
    %11 = vector.shape_cast %10 : vector<8xf32> to vector<8x1xf32>
    %12 = vector.broadcast %11 : vector<8x1xf32> to vector<8x8xf32>
    %13 = arith.subf %9, %12 : vector<8x8xf32>
    %14 = math.exp %13 : vector<8x8xf32>
    %cst_7 = arith.constant dense<0.000000e+00> : vector<8xf32>
    %15 = vector.multi_reduction <add>, %14, %cst_7 [1] : vector<8x8xf32> to vector<8xf32>
    %16 = vector.shape_cast %15 : vector<8xf32> to vector<8x1xf32>
    %17 = math.log %16 : vector<8x1xf32>
    %18 = arith.addf %11, %17 : vector<8x1xf32>
    %19 = arith.subf %18, %6 : vector<8x1xf32>
    %20 = vector.shape_cast %19 : vector<8x1xf32> to vector<1x8x1xf32>
    %cst_8 = arith.constant dense<0.000000e+00> : vector<1xf32>
    %21 = vector.multi_reduction <add>, %20, %cst_8 [1, 2] : vector<1x8x1xf32> to vector<1xf32>
    %22 = vector.shape_cast %21 : vector<1xf32> to vector<1x1x1xf32>
    %23 = vector.extract %22[0, 0, 0] : f32 from vector<1x1x1xf32>
    %cst_9 = arith.constant 8.000000e+00 : f32
    %24 = arith.divf %23, %cst_9 : f32
    %c0_10 = arith.constant 0 : index
    %c0_11 = arith.constant 0 : index
    %25 = memref.load %arg2[%c0_10, %c0_11] : memref<1x1xf32, #tpu.memory_space<smem>>
    memref.store %24, %arg2[%c0_10, %c0_11] : memref<1x1xf32, #tpu.memory_space<smem>>
    return
  }
}

module attributes {stable_mosaic.version = 11 : i64} {
  func.func @_bpr_kernel(%arg0: memref<3x8x32xf32, #tpu.memory_space<vmem>>, %arg1: memref<3x8x32xf32, #tpu.memory_space<vmem>>, %arg2: memref<3x8x32xf32, #tpu.memory_space<vmem>>, %arg3: memref<1x1xf32, #tpu.memory_space<smem>>, %arg4: memref<1x1xf32, #tpu.memory_space<smem>>) attributes {dimension_semantics = [], scalar_prefetch = 0 : i64, scratch_operands = 0 : i64, tpu.core_type = #tpu.core_type<tc>} {
    %c0 = arith.constant 0 : index
    %c0_0 = arith.constant 0 : index
    %c0_1 = arith.constant 0 : index
    %0 = vector.load %arg0[%c0, %c0_0, %c0_1] : memref<3x8x32xf32, #tpu.memory_space<vmem>>, vector<3x8x32xf32>
    %c0_2 = arith.constant 0 : index
    %c0_3 = arith.constant 0 : index
    %c0_4 = arith.constant 0 : index
    %1 = vector.load %arg1[%c0_2, %c0_3, %c0_4] : memref<3x8x32xf32, #tpu.memory_space<vmem>>, vector<3x8x32xf32>
    %c0_5 = arith.constant 0 : index
    %c0_6 = arith.constant 0 : index
    %c0_7 = arith.constant 0 : index
    %2 = vector.load %arg2[%c0_5, %c0_6, %c0_7] : memref<3x8x32xf32, #tpu.memory_space<vmem>>, vector<3x8x32xf32>
    %3 = arith.subf %2, %1 : vector<3x8x32xf32>
    %4 = arith.mulf %0, %3 : vector<3x8x32xf32>
    %cst = arith.constant dense<0.000000e+00> : vector<3x8xf32>
    %5 = vector.multi_reduction <add>, %4, %cst [2] : vector<3x8x32xf32> to vector<3x8xf32>
    %6 = vector.shape_cast %5 : vector<3x8xf32> to vector<3x8x1xf32>
    %cst_8 = arith.constant 0.000000e+00 : f32
    %7 = vector.broadcast %cst_8 : f32 to vector<3x8x1xf32>
    %8 = arith.maximumf %6, %7 : vector<3x8x1xf32>
    %9 = math.absf %6 : vector<3x8x1xf32>
    %cst_9 = arith.constant 0.000000e+00 : f32
    %10 = vector.broadcast %cst_9 : f32 to vector<3x8x1xf32>
    %11 = arith.subf %10, %9 : vector<3x8x1xf32>
    %12 = math.exp %11 : vector<3x8x1xf32>
    %cst_10 = arith.constant 1.000000e+00 : f32
    %13 = vector.broadcast %cst_10 : f32 to vector<3x8x1xf32>
    %14 = arith.addf %13, %12 : vector<3x8x1xf32>
    %15 = math.log %14 : vector<3x8x1xf32>
    %16 = arith.addf %8, %15 : vector<3x8x1xf32>
    %17 = vector.shape_cast %16 : vector<3x8x1xf32> to vector<1x3x8x1xf32>
    %cst_11 = arith.constant dense<0.000000e+00> : vector<1xf32>
    %18 = vector.multi_reduction <add>, %17, %cst_11 [1, 2, 3] : vector<1x3x8x1xf32> to vector<1xf32>
    %19 = vector.shape_cast %18 : vector<1xf32> to vector<1x1x1x1xf32>
    %20 = vector.extract %19[0, 0, 0, 0] : f32 from vector<1x1x1x1xf32>
    %cst_12 = arith.constant 8.000000e+00 : f32
    %21 = arith.divf %20, %cst_12 : f32
    %c0_13 = arith.constant 0 : index
    %c0_14 = arith.constant 0 : index
    %22 = memref.load %arg3[%c0_13, %c0_14] : memref<1x1xf32, #tpu.memory_space<smem>>
    memref.store %21, %arg3[%c0_13, %c0_14] : memref<1x1xf32, #tpu.memory_space<smem>>
    %23 = arith.mulf %0, %0 : vector<3x8x32xf32>
    %24 = vector.shape_cast %23 : vector<3x8x32xf32> to vector<1x3x8x32xf32>
    %cst_15 = arith.constant dense<0.000000e+00> : vector<1xf32>
    %25 = vector.multi_reduction <add>, %24, %cst_15 [1, 2, 3] : vector<1x3x8x32xf32> to vector<1xf32>
    %26 = vector.shape_cast %25 : vector<1xf32> to vector<1x1x1x1xf32>
    %27 = vector.extract %26[0, 0, 0, 0] : f32 from vector<1x1x1x1xf32>
    %28 = arith.mulf %1, %1 : vector<3x8x32xf32>
    %29 = vector.shape_cast %28 : vector<3x8x32xf32> to vector<1x3x8x32xf32>
    %cst_16 = arith.constant dense<0.000000e+00> : vector<1xf32>
    %30 = vector.multi_reduction <add>, %29, %cst_16 [1, 2, 3] : vector<1x3x8x32xf32> to vector<1xf32>
    %31 = vector.shape_cast %30 : vector<1xf32> to vector<1x1x1x1xf32>
    %32 = vector.extract %31[0, 0, 0, 0] : f32 from vector<1x1x1x1xf32>
    %33 = arith.addf %27, %32 : f32
    %34 = arith.mulf %2, %2 : vector<3x8x32xf32>
    %35 = vector.shape_cast %34 : vector<3x8x32xf32> to vector<1x3x8x32xf32>
    %cst_17 = arith.constant dense<0.000000e+00> : vector<1xf32>
    %36 = vector.multi_reduction <add>, %35, %cst_17 [1, 2, 3] : vector<1x3x8x32xf32> to vector<1xf32>
    %37 = vector.shape_cast %36 : vector<1xf32> to vector<1x1x1x1xf32>
    %38 = vector.extract %37[0, 0, 0, 0] : f32 from vector<1x1x1x1xf32>
    %39 = arith.addf %33, %38 : f32
    %cst_18 = arith.constant 5.000000e-01 : f32
    %40 = arith.mulf %cst_18, %39 : f32
    %cst_19 = arith.constant 8.000000e+00 : f32
    %41 = arith.divf %40, %cst_19 : f32
    %c0_20 = arith.constant 0 : index
    %c0_21 = arith.constant 0 : index
    %42 = memref.load %arg4[%c0_20, %c0_21] : memref<1x1xf32, #tpu.memory_space<smem>>
    memref.store %41, %arg4[%c0_20, %c0_21] : memref<1x1xf32, #tpu.memory_space<smem>>
    return
  }
}

</mosaic_0001>

<llo_original>
// kernel: lightgcn_forward.6
$region0: #{lightgcn_forward.6}
  #allocation0 [shape = 'u32[]', space=smem, size = 0x4, offset = 0x4, fixed_abs, tag = 'smem constant byte address 0x4 - core index']
  #allocation1 [shape = 'u32[144,128]{1,0:T(1,128)}', space=vmem, size = 0x12000, scoped, tag = 'internal scratch']
  %s0 = inlined_call_operand.vmem [shape: f32[24,24], index: 0, kind: input, shape index: {}]
  %s1 = inlined_call_operand.vmem [shape: f32[24,24], index: 1, kind: input, shape index: {}]
  %s2 = inlined_call_operand.vmem [shape: f32[24,32], index: 2, kind: input, shape index: {}]
  %s3 = inlined_call_operand.vmem [shape: f32[40,40], index: 3, kind: input, shape index: {}]
  %s4 = inlined_call_operand.vmem [shape: f32[40,40], index: 4, kind: input, shape index: {}]
  %s5 = inlined_call_operand.vmem [shape: f32[40,32], index: 5, kind: input, shape index: {}]
  %s6 = inlined_call_operand.vmem [shape: f32[24,32], index: 6, kind: output, shape index: {0}]
  %s7 = inlined_call_operand.vmem [shape: f32[40,32], index: 7, kind: output, shape index: {1}]
  %8 = xla_tuple %s6, %s7
  %s9 = sld [smem:[#allocation0]]
  $region42: #{lightgcn_forward.6} parent=0
    _
  %s11 = ssub.s32 1, %s9
  %s12 = scalar_select 0, %s11, %s9
  // Predicated region
  $region2: #{lightgcn_forward.6} parent=0 // pred_check
    _
  $region3: #{lightgcn_forward.6} parent=0 // pred_check_branch
    %14 = sbr.rel (0) target = $region5
  $region4: #{lightgcn_forward.6} parent=0 // pred_region
    _
  $region5: #{lightgcn_forward.6} parent=0 // pred_fallthru
    _
  // Predicated region
  $region6: #{lightgcn_forward.6} parent=0 // pred_check
    _
  $region7: #{lightgcn_forward.6} parent=0 // pred_check_branch
    %16 = sbr.rel (0) target = $region9
  $region8: #{lightgcn_forward.6} parent=0 // pred_region
    _
  $region9: #{lightgcn_forward.6} parent=0 // pred_fallthru
    _
  // Predicated region
  $region10: #{lightgcn_forward.6} parent=0 // pred_check
    _
  $region11: #{lightgcn_forward.6} parent=0 // pred_check_branch
    %18 = sbr.rel (0) target = $region13
  $region12: #{lightgcn_forward.6} parent=0 // pred_region
    _
  $region13: #{lightgcn_forward.6} parent=0 // pred_fallthru
    _
  // Predicated region
  $region14: #{lightgcn_forward.6} parent=0 // pred_check
    _
  $region15: #{lightgcn_forward.6} parent=0 // pred_check_branch
    %20 = sbr.rel (0) target = $region17
  $region16: #{lightgcn_forward.6} parent=0 // pred_region
    _
  $region17: #{lightgcn_forward.6} parent=0 // pred_fallthru
    _
  // Predicated region
  $region18: #{lightgcn_forward.6} parent=0 // pred_check
    _
  $region19: #{lightgcn_forward.6} parent=0 // pred_check_branch
    %22 = sbr.rel (0) target = $region21
  $region20: #{lightgcn_forward.6} parent=0 // pred_region
    _
  $region21: #{lightgcn_forward.6} parent=0 // pred_fallthru
    _
  // Predicated region
  $region22: #{lightgcn_forward.6} parent=0 // pred_check
    _
  $region23: #{lightgcn_forward.6} parent=0 // pred_check_branch
    %24 = sbr.rel (0) target = $region25
  $region24: #{lightgcn_forward.6} parent=0 // pred_region
    _
  $region25: #{lightgcn_forward.6} parent=0 // pred_fallthru
    _
  %v25 = vld [vmem:[%s0] sm:$0xff]
  %v26 = vld [vmem:[%s0 + $0x8] sm:$0xff]
  %v27 = vld [vmem:[%s0 + $0x10] sm:$0xff]
  %v28 = vld [vmem:[%s1] sm:$0xff]
  %v29 = vld [vmem:[%s1 + $0x8] sm:$0xff]
  %v30 = vld [vmem:[%s1 + $0x10] sm:$0xff]
  %v31 = vadd.f32 %v25, %v28
  %v32 = vadd.f32 %v26, %v29
  %v33 = vadd.f32 %v27, %v30
  %v34 = vld [vmem:[%s2] sm:$0xff]
  %v35 = vld [vmem:[%s2 + $0x8] sm:$0xff]
  %v36 = vld [vmem:[%s2 + $0x10] sm:$0xff]
  %vm37 = vcmask 195584
  %v39 = vsel %vm37, %v31, 0
  %v42 = vsel %vm37, %v32, 0
  %v45 = vsel %vm37, %v33, 0
  %47 = vmatprep.subr.mxu0 0.0
  %48 = vmatpush1.msra.mxu0 0.0
  %49 = vmatprep.subr.mxu0 0.0
  %50 = vmatpush1.msra.mxu0 0.0
  %51 = vmatprep.subr.mxu0 0.0
  %52 = vmatpush1.msra.mxu0 0.0
  %53 = vmatprep.subr.mxu0 0.0
  %54 = vmatpush1.msra.mxu0 0.0
  %55 = vmatprep.subr.mxu0 0.0
  %56 = vmatpush1.msra.mxu0 0.0
  %57 = vmatprep.subr.mxu0 0.0
  %58 = vmatpush1.msra.mxu0 0.0
  %59 = vmatprep.subr.mxu0 0.0
  %60 = vmatpush1.msra.mxu0 0.0
  %61 = vmatprep.subr.mxu0 0.0
  %62 = vmatpush1.msra.mxu0 0.0
  %63 = vmatprep.subr.mxu0 0.0
  %64 = vmatpush1.msra.mxu0 0.0
  %65 = vmatprep.subr.mxu0 0.0
  %66 = vmatpush1.msra.mxu0 0.0
  %67 = vmatprep.subr.mxu0 0.0
  %68 = vmatpush1.msra.mxu0 0.0
  %69 = vmatprep.subr.mxu0 0.0
  %70 = vmatpush1.msra.mxu0 0.0
  %71 = vmatprep.subr.mxu0 0.0
  %72 = vmatpush1.msra.mxu0 0.0
  %73 = vmatprep.subr.mxu0 0.0
  %74 = vmatpush1.msra.mxu0 %v36
  %75 = vmatprep.subr.mxu0 0.0
  %76 = vmatpush1.msra.mxu0 %v35
  %77 = vmatprep.subr.mxu0 0.0
  %78 = vmatpush1.msra.mxu0 %v34
  %79 = vmatprep.subr.mxu0 0.0
  %80 = vmatpush2.msra.mxu0 0.0
  %81 = vmatprep.subr.mxu0 0.0
  %82 = vmatpush2.msra.mxu0 0.0
  %83 = vmatprep.subr.mxu0 0.0
  %84 = vmatpush2.msra.mxu0 0.0
  %85 = vmatprep.subr.mxu0 0.0
  %86 = vmatpush2.msra.mxu0 0.0
  %87 = vmatprep.subr.mxu0 0.0
  %88 = vmatpush2.msra.mxu0 0.0
  %89 = vmatprep.subr.mxu0 0.0
  %90 = vmatpush2.msra.mxu0 0.0
  %91 = vmatprep.subr.mxu0 0.0
  %92 = vmatpush2.msra.mxu0 0.0
  %93 = vmatprep.subr.mxu0 0.0
  %94 = vmatpush2.msra.mxu0 0.0
  %95 = vmatprep.subr.mxu0 0.0
  %96 = vmatpush2.msra.mxu0 0.0
  %97 = vmatprep.subr.mxu0 0.0
  %98 = vmatpush2.msra.mxu0 0.0
  %99 = vmatprep.subr.mxu0 0.0
  %100 = vmatpush2.msra.mxu0 0.0
  %101 = vmatprep.subr.mxu0 0.0
  %102 = vmatpush2.msra.mxu0 0.0
  %103 = vmatprep.subr.mxu0 0.0
  %104 = vmatpush2.msra.mxu0 0.0
  %105 = vmatprep.subr.mxu0 0.0
  %106 = vmatpush2.msra.mxu0 0.0
  %107 = vmatprep.subr.mxu0 0.0
  %108 = vmatpush2.msra.mxu0 0.0
  %109 = vmatprep.subr.mxu0 0.0
  %110 = vmatpush2.msra.mxu0 0.0
  %111 = vmatprep.mubr.f32.mxu0 0.0
  %112 = vmatmul.mubr.f32.gmra.mxu0 %v39
  %v113 = vpop.f32.mrf.mxu0
  %v114 = vadd.f32 0.0, %v113
  %v115 = vpop.f32.mrf.mxu0
  %116 = vmatprep.mubr.f32.mxu0 0.0
  %117 = vmatmul.mubr.f32.gmra.mxu0 %v42
  %v118 = vpop.f32.mrf.mxu0
  %v119 = vadd.f32 0.0, %v118
  %v120 = vpop.f32.mrf.mxu0
  %121 = vmatprep.mubr.f32.mxu0 0.0
  %122 = vmatmul.mubr.f32.gmra.mxu0 %v45
  %v123 = vpop.f32.mrf.mxu0
  %v124 = vadd.f32 0.0, %v123
  %v125 = vpop.f32.mrf.mxu0
  %126 = vdwg.mxu0
  %vm127 = vcmask 261120
  %128 = vst.msk [vmem:[%s6] sm:$0xff] %vm127, %v114
  %129 = vst.msk [vmem:[%s6 + $0x8] sm:$0xff] %vm127, %v119
  %130 = vst.msk [vmem:[%s6 + $0x10] sm:$0xff] %vm127, %v124
  %v131 = vld [vmem:[%s3] sm:$0xff]
  %v132 = vld [vmem:[%s3 + $0x8] sm:$0xff]
  %v133 = vld [vmem:[%s3 + $0x10] sm:$0xff]
  %v134 = vld [vmem:[%s3 + $0x18] sm:$0xff]
  %v135 = vld [vmem:[%s3 + $0x20] sm:$0xff]
  %v136 = vld [vmem:[%s4] sm:$0xff]
  %v137 = vld [vmem:[%s4 + $0x8] sm:$0xff]
  %v138 = vld [vmem:[%s4 + $0x10] sm:$0xff]
  %v139 = vld [vmem:[%s4 + $0x18] sm:$0xff]
  %v140 = vld [vmem:[%s4 + $0x20] sm:$0xff]
  %v141 = vadd.f32 %v131, %v136
  %v142 = vadd.f32 %v132, %v137
  %v143 = vadd.f32 %v133, %v138
  %v144 = vadd.f32 %v134, %v139
  %v145 = vadd.f32 %v135, %v140
  %v146 = vld [vmem:[%s5] sm:$0xff]
  %v147 = vld [vmem:[%s5 + $0x8] sm:$0xff]
  %v148 = vld [vmem:[%s5 + $0x10] sm:$0xff]
  %v149 = vld [vmem:[%s5 + $0x18] sm:$0xff]
  %v150 = vld [vmem:[%s5 + $0x20] sm:$0xff]
  %vm151 = vcmask 326656
  %v153 = vsel %vm151, %v141, 0
  %v156 = vsel %vm151, %v142, 0
  %v159 = vsel %vm151, %v143, 0
  %v162 = vsel %vm151, %v144, 0
  %v165 = vsel %vm151, %v145, 0
  %167 = vmatprep.subr.mxu0 0.0
  %168 = vmatpush1.msra.mxu0 0.0
  %169 = vmatprep.subr.mxu0 0.0
  %170 = vmatpush1.msra.mxu0 0.0
  %171 = vmatprep.subr.mxu0 0.0
  %172 = vmatpush1.msra.mxu0 0.0
  %173 = vmatprep.subr.mxu0 0.0
  %174 = vmatpush1.msra.mxu0 0.0
  %175 = vmatprep.subr.mxu0 0.0
  %176 = vmatpush1.msra.mxu0 0.0
  %177 = vmatprep.subr.mxu0 0.0
  %178 = vmatpush1.msra.mxu0 0.0
  %179 = vmatprep.subr.mxu0 0.0
  %180 = vmatpush1.msra.mxu0 0.0
  %181 = vmatprep.subr.mxu0 0.0
  %182 = vmatpush1.msra.mxu0 0.0
  %183 = vmatprep.subr.mxu0 0.0
  %184 = vmatpush1.msra.mxu0 0.0
  %185 = vmatprep.subr.mxu0 0.0
  %186 = vmatpush1.msra.mxu0 0.0
  %187 = vmatprep.subr.mxu0 0.0
  %188 = vmatpush1.msra.mxu0 0.0
  %189 = vmatprep.subr.mxu0 0.0
  %190 = vmatpush1.msra.mxu0 %v150
  %191 = vmatprep.subr.mxu0 0.0
  %192 = vmatpush1.msra.mxu0 %v149
  %193 = vmatprep.subr.mxu0 0.0
  %194 = vmatpush1.msra.mxu0 %v148
  %195 = vmatprep.subr.mxu0 0.0
  %196 = vmatpush1.msra.mxu0 %v147
  %197 = vmatprep.subr.mxu0 0.0
  %198 = vmatpush1.msra.mxu0 %v146
  %199 = vmatprep.subr.mxu0 0.0
  %200 = vmatpush2.msra.mxu0 0.0
  %201 = vmatprep.subr.mxu0 0.0
  %202 = vmatpush2.msra.mxu0 0.0
  %203 = vmatprep.subr.mxu0 0.0
  %204 = vmatpush2.msra.mxu0 0.0
  %205 = vmatprep.subr.mxu0 0.0
  %206 = vmatpush2.msra.mxu0 0.0
  %207 = vmatprep.subr.mxu0 0.0
  %208 = vmatpush2.msra.mxu0 0.0
  %209 = vmatprep.subr.mxu0 0.0
  %210 = vmatpush2.msra.mxu0 0.0
  %211 = vmatprep.subr.mxu0 0.0
  %212 = vmatpush2.msra.mxu0 0.0
  %213 = vmatprep.subr.mxu0 0.0
  %214 = vmatpush2.msra.mxu0 0.0
  %215 = vmatprep.subr.mxu0 0.0
  %216 = vmatpush2.msra.mxu0 0.0
  %217 = vmatprep.subr.mxu0 0.0
  %218 = vmatpush2.msra.mxu0 0.0
  %219 = vmatprep.subr.mxu0 0.0
  %220 = vmatpush2.msra.mxu0 0.0
  %221 = vmatprep.subr.mxu0 0.0
  %222 = vmatpush2.msra.mxu0 0.0
  %223 = vmatprep.subr.mxu0 0.0
  %224 = vmatpush2.msra.mxu0 0.0
  %225 = vmatprep.subr.mxu0 0.0
  %226 = vmatpush2.msra.mxu0 0.0
  %227 = vmatprep.subr.mxu0 0.0
  %228 = vmatpush2.msra.mxu0 0.0
  %229 = vmatprep.subr.mxu0 0.0
  %230 = vmatpush2.msra.mxu0 0.0
  %231 = vmatprep.mubr.f32.mxu0 0.0
  %232 = vmatmul.mubr.f32.gmra.mxu0 %v153
  %v233 = vpop.f32.mrf.mxu0
  %v234 = vadd.f32 0.0, %v233
  %v235 = vpop.f32.mrf.mxu0
  %236 = vmatprep.mubr.f32.mxu0 0.0
  %237 = vmatmul.mubr.f32.gmra.mxu0 %v156
  %v238 = vpop.f32.mrf.mxu0
  %v239 = vadd.f32 0.0, %v238
  %v240 = vpop.f32.mrf.mxu0
  %241 = vmatprep.mubr.f32.mxu0 0.0
  %242 = vmatmul.mubr.f32.gmra.mxu0 %v159
  %v243 = vpop.f32.mrf.mxu0
  %v244 = vadd.f32 0.0, %v243
  %v245 = vpop.f32.mrf.mxu0
  %246 = vmatprep.mubr.f32.mxu0 0.0
  %247 = vmatmul.mubr.f32.gmra.mxu0 %v162
  %v248 = vpop.f32.mrf.mxu0
  %v249 = vadd.f32 0.0, %v248
  %v250 = vpop.f32.mrf.mxu0
  %251 = vmatprep.mubr.f32.mxu0 0.0
  %252 = vmatmul.mubr.f32.gmra.mxu0 %v165
  %v253 = vpop.f32.mrf.mxu0
  %v254 = vadd.f32 0.0, %v253
  %v255 = vpop.f32.mrf.mxu0
  %256 = vdwg.mxu0
  %257 = vst.msk [vmem:[%s7] sm:$0xff] %vm127, %v234
  %258 = vst.msk [vmem:[%s7 + $0x8] sm:$0xff] %vm127, %v239
  %259 = vst.msk [vmem:[%s7 + $0x10] sm:$0xff] %vm127, %v244
  %260 = vst.msk [vmem:[%s7 + $0x18] sm:$0xff] %vm127, %v249
  %261 = vst.msk [vmem:[%s7 + $0x20] sm:$0xff] %vm127, %v254
  // Predicated region
  $region26: #{lightgcn_forward.6} parent=0 // pred_check
    _
  $region27: #{lightgcn_forward.6} parent=0 // pred_check_branch
    %263 = sbr.rel (0) target = $region29
  $region28: #{lightgcn_forward.6} parent=0 // pred_region
    _
  $region29: #{lightgcn_forward.6} parent=0 // pred_fallthru
    _
  // Predicated region
  $region30: #{lightgcn_forward.6} parent=0 // pred_check
    _
  $region31: #{lightgcn_forward.6} parent=0 // pred_check_branch
    %265 = sbr.rel (0) target = $region33
  $region32: #{lightgcn_forward.6} parent=0 // pred_region
    _
  $region33: #{lightgcn_forward.6} parent=0 // pred_fallthru
    _
  // Predicated region
  $region34: #{lightgcn_forward.6} parent=0 // pred_check
    _
  $region35: #{lightgcn_forward.6} parent=0 // pred_check_branch
    %267 = sbr.rel (0) target = $region37
  $region36: #{lightgcn_forward.6} parent=0 // pred_region
    _
  $region37: #{lightgcn_forward.6} parent=0 // pred_fallthru
    _
  // Predicated region
  $region38: #{lightgcn_forward.6} parent=0 // pred_check
    _
  $region39: #{lightgcn_forward.6} parent=0 // pred_check_branch
    %269 = sbr.rel (0) target = $region41
  $region40: #{lightgcn_forward.6} parent=0 // pred_region
    _
  $region41: #{lightgcn_forward.6} parent=0 // pred_fallthru
    _

// kernel: lightgcn_forward.7
$region0: #{lightgcn_forward.7}
  #allocation0 [shape = 'u32[]', space=smem, size = 0x4, offset = 0x4, fixed_abs, tag = 'smem constant byte address 0x4 - core index']
  #allocation1 [shape = 'u32[144,128]{1,0:T(1,128)}', space=vmem, size = 0x12000, scoped, tag = 'internal scratch']
  %s0 = inlined_call_operand.vmem [shape: bf16[3,24,40], index: 0, kind: input, shape index: {}]
  %s1 = inlined_call_operand.vmem [shape: bf16[3,40,24], index: 1, kind: input, shape index: {}]
  %s2 = inlined_call_operand.vmem [shape: bf16[3,24,32], index: 2, kind: input, shape index: {}]
  %s3 = inlined_call_operand.vmem [shape: bf16[3,40,32], index: 3, kind: input, shape index: {}]
  %s4 = inlined_call_operand.vmem [shape: f32[24,32], index: 4, kind: input, shape index: {}]
  %s5 = inlined_call_operand.vmem [shape: f32[40,32], index: 5, kind: input, shape index: {}]
  %s6 = inlined_call_operand.vmem [shape: f32[3,24,32], index: 6, kind: output, shape index: {0}]
  %s7 = inlined_call_operand.vmem [shape: f32[3,40,32], index: 7, kind: output, shape index: {1}]
  %8 = xla_tuple %s6, %s7
  %s9 = sld [smem:[#allocation0]]
  $region65: #{lightgcn_forward.7} parent=0
    _
  %s11 = ssub.s32 1, %s9
  %s12 = scalar_select 0, %s11, %s9
  loop: start=0, step=1, limit=5
  $region2: #{lightgcn_forward.7} parent=0 // loop_pre_header
    _
  $region3: #{lightgcn_forward.7} parent=0 // loop_header
    %s14 = sphi 0, %s18
    %p15 = scmp.ge.s32.totalorder %s14, 5
    %s24 = sphi 0, %s26
    %s27 = sphi 0, %s24
    %s28 = sphi 0, %s27
    %s44 = sphi 0, %s28
    %s50 = sphi 0, %s52
    %s53 = sphi 0, %s50
    %s54 = sphi 0, %s53
    %s70 = sphi 0, %s54
    %s76 = sphi 0, %s78
    %s79 = sphi 0, %s76
    %s80 = sphi 0, %s79
    %s96 = sphi 0, %s80
    %s102 = sphi 0, %s104
    %s105 = sphi 0, %s102
    %s106 = sphi 0, %s105
    %s122 = sphi 0, %s106
    %s126 = sphi 0, %s126
    %s128 = sphi 0, %s126
    %s129 = sphi 0, %s128
    %s143 = sphi 0, %s129
    %s147 = sphi 0, %s147
    %s149 = sphi 0, %s147
    %s150 = sphi 0, %s149
    %s164 = sphi 0, %s150
    %s170 = sphi 0, %s172
    %s173 = sphi 0, %s170
    %s174 = sphi 0, %s173
    %s190 = sphi 0, %s174
    %s196 = sphi 0, %s198
    %s199 = sphi 0, %s196
    %s200 = sphi 0, %s199
    %s216 = sphi 0, %s200
  $region4: #{lightgcn_forward.7} parent=0 // loop_header_branch
    %17 = sbr.rel (%p15) target = $region8
  $region5: #{lightgcn_forward.7} parent=0 // loop_body
    %s19 = ssub.s32 %s14, 1
    %s20 = ssub.s32 %s14, 2
    %s21 = sadd.s32 %s14, 1
    %s22 = ssub.s32 %s14, %s21
    %p23 = scmp.eq.s32.totalorder %s22, 0
    %s25 = sadd.s32 %s24, 1
    %s26 = scalar_select %p23, %s24, %s25
    %p29 = pneg %p23
    %p30 = scmp.eq.s32.totalorder %s14, 2
    %p31 = por %p29, %p30
    %p32 = scmp.ne.s32.totalorder %s24, %s27
    %p33 = scmp.eq.s32.totalorder %s14, 0
    %p34 = por %p32, %p33
    %p35 = scmp.ne.s32.totalorder %s24, %s27
    %p36 = scmp.eq.s32.totalorder %s19, 2
    %p37 = por %p35, %p36
    %p38 = scmp.ne.s32.totalorder %s27, %s28
    %p39 = scmp.eq.s32.totalorder %s19, 0
    %p40 = por %p38, %p39
    %p41 = scmp.ne.s32.totalorder %s27, %s28
    %p42 = scmp.eq.s32.totalorder %s20, 2
    %p43 = por %p41, %p42
    %p45 = scmp.ne.s32.totalorder %s28, %s44
    %p46 = scmp.eq.s32.totalorder %s20, 0
    %p47 = por %p45, %p46
    %s48 = ssub.s32 %s14, %s21
    %p49 = scmp.eq.s32.totalorder %s48, 0
    %s51 = sadd.s32 %s50, 1
    %s52 = scalar_select %p49, %s50, %s51
    %p55 = pneg %p49
    %p56 = scmp.eq.s32.totalorder %s14, 2
    %p57 = por %p55, %p56
    %p58 = scmp.ne.s32.totalorder %s50, %s53
    %p59 = scmp.eq.s32.totalorder %s14, 0
    %p60 = por %p58, %p59
    %p61 = scmp.ne.s32.totalorder %s50, %s53
    %p62 = scmp.eq.s32.totalorder %s19, 2
    %p63 = por %p61, %p62
    %p64 = scmp.ne.s32.totalorder %s53, %s54
    %p65 = scmp.eq.s32.totalorder %s19, 0
    %p66 = por %p64, %p65
    %p67 = scmp.ne.s32.totalorder %s53, %s54
    %p68 = scmp.eq.s32.totalorder %s20, 2
    %p69 = por %p67, %p68
    %p71 = scmp.ne.s32.totalorder %s54, %s70
    %p72 = scmp.eq.s32.totalorder %s20, 0
    %p73 = por %p71, %p72
    %s74 = ssub.s32 %s14, %s21
    %p75 = scmp.eq.s32.totalorder %s74, 0
    %s77 = sadd.s32 %s76, 1
    %s78 = scalar_select %p75, %s76, %s77
    %p81 = pneg %p75
    %p82 = scmp.eq.s32.totalorder %s14, 2
    %p83 = por %p81, %p82
    %p84 = scmp.ne.s32.totalorder %s76, %s79
    %p85 = scmp.eq.s32.totalorder %s14, 0
    %p86 = por %p84, %p85
    %p87 = scmp.ne.s32.totalorder %s76, %s79
    %p88 = scmp.eq.s32.totalorder %s19, 2
    %p89 = por %p87, %p88
    %p90 = scmp.ne.s32.totalorder %s79, %s80
    %p91 = scmp.eq.s32.totalorder %s19, 0
    %p92 = por %p90, %p91
    %p93 = scmp.ne.s32.totalorder %s79, %s80
    %p94 = scmp.eq.s32.totalorder %s20, 2
    %p95 = por %p93, %p94
    %p97 = scmp.ne.s32.totalorder %s80, %s96
    %p98 = scmp.eq.s32.totalorder %s20, 0
    %p99 = por %p97, %p98
    %s100 = ssub.s32 %s14, %s21
    %p101 = scmp.eq.s32.totalorder %s100, 0
    %s103 = sadd.s32 %s102, 1
    %s104 = scalar_select %p101, %s102, %s103
    %p107 = pneg %p101
    %p108 = scmp.eq.s32.totalorder %s14, 2
    %p109 = por %p107, %p108
    %p110 = scmp.ne.s32.totalorder %s102, %s105
    %p111 = scmp.eq.s32.totalorder %s14, 0
    %p112 = por %p110, %p111
    %p113 = scmp.ne.s32.totalorder %s102, %s105
    %p114 = scmp.eq.s32.totalorder %s19, 2
    %p115 = por %p113, %p114
    %p116 = scmp.ne.s32.totalorder %s105, %s106
    %p117 = scmp.eq.s32.totalorder %s19, 0
    %p118 = por %p116, %p117
    %p119 = scmp.ne.s32.totalorder %s105, %s106
    %p120 = scmp.eq.s32.totalorder %s20, 2
    %p121 = por %p119, %p120
    %p123 = scmp.ne.s32.totalorder %s106, %s122
    %p124 = scmp.eq.s32.totalorder %s20, 0
    %p125 = por %p123, %p124
    %s127 = sadd.s32 %s126, 1
    %p130 = scmp.eq.s32.totalorder %s14, 2
    %p131 = scmp.ne.s32.totalorder %s126, %s128
    %p132 = scmp.eq.s32.totalorder %s14, 0
    %p133 = por %p131, %p132
    %p134 = scmp.ne.s32.totalorder %s126, %s128
    %p135 = scmp.eq.s32.totalorder %s19, 2
    %p136 = por %p134, %p135
    %p137 = scmp.ne.s32.totalorder %s128, %s129
    %p138 = scmp.eq.s32.totalorder %s19, 0
    %p139 = por %p137, %p138
    %p140 = scmp.ne.s32.totalorder %s128, %s129
    %p141 = scmp.eq.s32.totalorder %s20, 2
    %p142 = por %p140, %p141
    %p144 = scmp.ne.s32.totalorder %s129, %s143
    %p145 = scmp.eq.s32.totalorder %s20, 0
    %p146 = por %p144, %p145
    %s148 = sadd.s32 %s147, 1
    %p151 = scmp.eq.s32.totalorder %s14, 2
    %p152 = scmp.ne.s32.totalorder %s147, %s149
    %p153 = scmp.eq.s32.totalorder %s14, 0
    %p154 = por %p152, %p153
    %p155 = scmp.ne.s32.totalorder %s147, %s149
    %p156 = scmp.eq.s32.totalorder %s19, 2
    %p157 = por %p155, %p156
    %p158 = scmp.ne.s32.totalorder %s149, %s150
    %p159 = scmp.eq.s32.totalorder %s19, 0
    %p160 = por %p158, %p159
    %p161 = scmp.ne.s32.totalorder %s149, %s150
    %p162 = scmp.eq.s32.totalorder %s20, 2
    %p163 = por %p161, %p162
    %p165 = scmp.ne.s32.totalorder %s150, %s164
    %p166 = scmp.eq.s32.totalorder %s20, 0
    %p167 = por %p165, %p166
    %s168 = ssub.s32 %s14, %s21
    %p169 = scmp.eq.s32.totalorder %s168, 0
    %s171 = sadd.s32 %s170, 1
    %s172 = scalar_select %p169, %s170, %s171
    %p175 = pneg %p169
    %p176 = scmp.eq.s32.totalorder %s14, 2
    %p177 = por %p175, %p176
    %p178 = scmp.ne.s32.totalorder %s170, %s173
    %p179 = scmp.eq.s32.totalorder %s14, 0
    %p180 = por %p178, %p179
    %p181 = scmp.ne.s32.totalorder %s170, %s173
    %p182 = scmp.eq.s32.totalorder %s19, 2
    %p183 = por %p181, %p182
    %p184 = scmp.ne.s32.totalorder %s173, %s174
    %p185 = scmp.eq.s32.totalorder %s19, 0
    %p186 = por %p184, %p185
    %p187 = scmp.ne.s32.totalorder %s173, %s174
    %p188 = scmp.eq.s32.totalorder %s20, 2
    %p189 = por %p187, %p188
    %p191 = scmp.ne.s32.totalorder %s174, %s190
    %p192 = scmp.eq.s32.totalorder %s20, 0
    %p193 = por %p191, %p192
    %s194 = ssub.s32 %s14, %s21
    %p195 = scmp.eq.s32.totalorder %s194, 0
    %s197 = sadd.s32 %s196, 1
    %s198 = scalar_select %p195, %s196, %s197
    %p201 = pneg %p195
    %p202 = scmp.eq.s32.totalorder %s14, 2
    %p203 = por %p201, %p202
    %p204 = scmp.ne.s32.totalorder %s196, %s199
    %p205 = scmp.eq.s32.totalorder %s14, 0
    %p206 = por %p204, %p205
    %p207 = scmp.ne.s32.totalorder %s196, %s199
    %p208 = scmp.eq.s32.totalorder %s19, 2
    %p209 = por %p207, %p208
    %p210 = scmp.ne.s32.totalorder %s199, %s200
    %p211 = scmp.eq.s32.totalorder %s19, 0
    %p212 = por %p210, %p211
    %p213 = scmp.ne.s32.totalorder %s199, %s200
    %p214 = scmp.eq.s32.totalorder %s20, 2
    %p215 = por %p213, %p214
    %p217 = scmp.ne.s32.totalorder %s200, %s216
    %p218 = scmp.eq.s32.totalorder %s20, 0
    %p219 = por %p217, %p218
    %p220 = scmp.le.s32.totalorder 1, %s14
    %p221 = scmp.lt.s32.totalorder %s14, 4
    %p222 = pnand %p220, %p221
    %p223 = pneg %p222
    // Predicated region
    $region9: #{lightgcn_forward.7} parent=5 // pred_check
      _
    $region10: #{lightgcn_forward.7} parent=5 // pred_check_branch
      %225 = sbr.rel (%p222) target = $region12
    $region11: #{lightgcn_forward.7} parent=5 // pred_region
      %s226 = ssub.s32 %s14, 1
      // Predicated region
      $region13: #{lightgcn_forward.7} parent=11 // pred_check
        %p227 = pneg %p139
      $region14: #{lightgcn_forward.7} parent=11 // pred_check_branch
        %229 = sbr.rel (%p227) target = $region16
      $region15: #{lightgcn_forward.7} parent=11 // pred_region
        _
      $region16: #{lightgcn_forward.7} parent=11 // pred_fallthru
        _
      // Predicated region
      $region17: #{lightgcn_forward.7} parent=11 // pred_check
        %p230 = pneg %p160
      $region18: #{lightgcn_forward.7} parent=11 // pred_check_branch
        %232 = sbr.rel (%p230) target = $region20
      $region19: #{lightgcn_forward.7} parent=11 // pred_region
        _
      $region20: #{lightgcn_forward.7} parent=11 // pred_fallthru
        _
    $region12: #{lightgcn_forward.7} parent=5 // pred_fallthru
      _
    %p233 = scmp.lt.s32.totalorder %s14, 3
    // Predicated region
    $region21: #{lightgcn_forward.7} parent=5 // pred_check
      %p234 = pneg %p233
    $region22: #{lightgcn_forward.7} parent=5 // pred_check_branch
      %236 = sbr.rel (%p234) target = $region24
    $region23: #{lightgcn_forward.7} parent=5 // pred_region
      // Predicated region
      $region25: #{lightgcn_forward.7} parent=23 // pred_check
        %p237 = pneg %p34
      $region26: #{lightgcn_forward.7} parent=23 // pred_check_branch
        %239 = sbr.rel (%p237) target = $region28
      $region27: #{lightgcn_forward.7} parent=23 // pred_region
        %p240 = scmp.lt.s32.totalorder %s14, 2
        %s241 = scalar_select %p240, %s14, 2
        %s242 = smul.addr %s241, 3
        %s243 = smul.addr %s242, 4
        %s244 = scalar_lea.vmem %s0, %s243
      $region28: #{lightgcn_forward.7} parent=23 // pred_fallthru
        _
      // Predicated region
      $region29: #{lightgcn_forward.7} parent=23 // pred_check
        %p245 = pneg %p60
      $region30: #{lightgcn_forward.7} parent=23 // pred_check_branch
        %247 = sbr.rel (%p245) target = $region32
      $region31: #{lightgcn_forward.7} parent=23 // pred_region
        %p248 = scmp.lt.s32.totalorder %s14, 2
        %s249 = scalar_select %p248, %s14, 2
        %s250 = smul.addr %s249, 5
        %s251 = smul.addr %s250, 4
        %s252 = scalar_lea.vmem %s1, %s251
      $region32: #{lightgcn_forward.7} parent=23 // pred_fallthru
        _
      // Predicated region
      $region33: #{lightgcn_forward.7} parent=23 // pred_check
        %p253 = pneg %p86
      $region34: #{lightgcn_forward.7} parent=23 // pred_check_branch
        %255 = sbr.rel (%p253) target = $region36
      $region35: #{lightgcn_forward.7} parent=23 // pred_region
        %p256 = scmp.lt.s32.totalorder %s14, 2
        %s257 = scalar_select %p256, %s14, 2
        %s258 = smul.addr %s257, 3
        %s259 = smul.addr %s258, 4
        %s260 = scalar_lea.vmem %s2, %s259
      $region36: #{lightgcn_forward.7} parent=23 // pred_fallthru
        _
      // Predicated region
      $region37: #{lightgcn_forward.7} parent=23 // pred_check
        %p261 = pneg %p112
      $region38: #{lightgcn_forward.7} parent=23 // pred_check_branch
        %263 = sbr.rel (%p261) target = $region40
      $region39: #{lightgcn_forward.7} parent=23 // pred_region
        %p264 = scmp.lt.s32.totalorder %s14, 2
        %s265 = scalar_select %p264, %s14, 2
        %s266 = smul.addr %s265, 5
        %s267 = smul.addr %s266, 4
        %s268 = scalar_lea.vmem %s3, %s267
      $region40: #{lightgcn_forward.7} parent=23 // pred_fallthru
        _
    $region24: #{lightgcn_forward.7} parent=5 // pred_fallthru
      _
    %p269 = scmp.le.s32.totalorder 1, %s14
    %p270 = scmp.lt.s32.totalorder %s14, 4
    %p271 = pnand %p269, %p270
    %p272 = pneg %p271
    // Predicated region
    $region41: #{lightgcn_forward.7} parent=5 // pred_check
      _
    $region42: #{lightgcn_forward.7} parent=5 // pred_check_branch
      %274 = sbr.rel (%p271) target = $region44
    $region43: #{lightgcn_forward.7} parent=5 // pred_region
      %s275 = ssub.s32 %s14, 1
      %p276 = scmp.lt.s32.totalorder %s19, 2
      %s277 = scalar_select %p276, %s19, 2
      %s278 = smul.addr %s277, 3
      %s279 = smul.addr %s278, 4
      %s280 = scalar_lea.vmem %s0, %s279
      %p281 = pneg %p40
      %p282 = pneg %p37
      %p283 = scmp.lt.s32.totalorder %s19, 2
      %s284 = scalar_select %p283, %s19, 2
      %s285 = smul.addr %s284, 5
      %s286 = smul.addr %s285, 4
      %s287 = scalar_lea.vmem %s1, %s286
      %p288 = pneg %p66
      %p289 = pneg %p63
      %p290 = scmp.lt.s32.totalorder %s19, 2
      %s291 = scalar_select %p290, %s19, 2
      %s292 = smul.addr %s291, 3
      %s293 = smul.addr %s292, 4
      %s294 = scalar_lea.vmem %s2, %s293
      %p295 = pneg %p92
      %p296 = pneg %p89
      %p297 = scmp.lt.s32.totalorder %s19, 2
      %s298 = scalar_select %p297, %s19, 2
      %s299 = smul.addr %s298, 5
      %s300 = smul.addr %s299, 4
      %s301 = scalar_lea.vmem %s3, %s300
      %p302 = pneg %p118
      %p303 = pneg %p115
      %p304 = pneg %p139
      %p305 = pneg %p136
      %p306 = pneg %p160
      %p307 = pneg %p157
      %p308 = pneg %p186
      %p309 = pneg %p183
      %p310 = scmp.lt.s32.totalorder %s19, 2
      %s311 = scalar_select %p310, %s19, 2
      %s312 = smul.addr %s311, 3
      %s313 = smul.addr %s312, 8
      %s314 = scalar_lea.vmem %s6, %s313
      %p315 = pneg %p212
      %p316 = pneg %p209
      %p317 = scmp.lt.s32.totalorder %s19, 2
      %s318 = scalar_select %p317, %s19, 2
      %s319 = smul.addr %s318, 5
      %s320 = smul.addr %s319, 8
      %s321 = scalar_lea.vmem %s7, %s320
      %p322 = scmp.lt.s32.totalorder %s19, 2
      %s323 = scalar_select %p322, %s19, 2
      %s324 = smul.addr %s323, 3
      %s325 = smul.addr %s324, 4
      %s326 = scalar_lea.vmem %s0, %s325
      %p327 = scmp.lt.s32.totalorder %s19, 2
      %s328 = scalar_select %p327, %s19, 2
      %s329 = smul.addr %s328, 5
      %s330 = smul.addr %s329, 4
      %s331 = scalar_lea.vmem %s1, %s330
      %p332 = scmp.lt.s32.totalorder %s19, 2
      %s333 = scalar_select %p332, %s19, 2
      %s334 = smul.addr %s333, 3
      %s335 = smul.addr %s334, 4
      %s336 = scalar_lea.vmem %s2, %s335
      %p337 = scmp.lt.s32.totalorder %s19, 2
      %s338 = scalar_select %p337, %s19, 2
      %s339 = smul.addr %s338, 5
      %s340 = smul.addr %s339, 4
      %s341 = scalar_lea.vmem %s3, %s340
      %p342 = scmp.lt.s32.totalorder %s19, 2
      %s343 = scalar_select %p342, %s19, 2
      %s344 = smul.addr %s343, 3
      %s345 = smul.addr %s344, 8
      %s346 = scalar_lea.vmem %s6, %s345
      %p347 = scmp.lt.s32.totalorder %s19, 2
      %s348 = scalar_select %p347, %s19, 2
      %s349 = smul.addr %s348, 5
      %s350 = smul.addr %s349, 8
      %s351 = scalar_lea.vmem %s7, %s350
      %v353 = vld [vmem:[%s326] sm:$0xf]
      %v354 = vld [vmem:[%s326 + $0x4] sm:$0xf]
      %v355 = vld [vmem:[%s326 + $0x8] sm:$0xf]
      %v356 = vld [vmem:[%s341] sm:$0xf]
      %v357 = vld [vmem:[%s341 + $0x4] sm:$0xf]
      %v358 = vld [vmem:[%s341 + $0x8] sm:$0xf]
      %v359 = vld [vmem:[%s341 + $0xc] sm:$0xf]
      %v360 = vld [vmem:[%s341 + $0x10] sm:$0xf]
      %v364 = vunpack.c.l.b16 %v353
      %v365 = vunpack.c.l.b16 %v354
      %v366 = vunpack.c.l.b16 %v355
      %v367 = vpack.c.b16 %v365, %v364
      %v368 = vpack.c.b16 %v366, %v366
      %v374 = vunpack.c.l.b16 %v356
      %v375 = vunpack.c.l.b16 %v357
      %v376 = vunpack.c.l.b16 %v358
      %v377 = vunpack.c.l.b16 %v359
      %v378 = vunpack.c.l.b16 %v360
      %v379 = vpack.c.b16 %v375, %v374
      %v380 = vpack.c.b16 %v377, %v376
      %v381 = vpack.c.b16 %v378, %v378
      %vm384 = vcmask 326656
      %v386 = vsel %vm384, %v367, 0
      %v389 = vsel %vm384, %v368, 0
      %vm391 = vcmask 1043456
      %v393 = vsel %vm391, %v381, 0
      %395 = vmatprep.subr.bf16.mxu0 0
      %396 = vmatpush1.bf16.msra.mxu0 0
      %397 = vmatprep.subr.bf16.mxu0 0
      %398 = vmatpush1.bf16.msra.mxu0 0
      %399 = vmatprep.subr.bf16.mxu0 0
      %400 = vmatpush1.bf16.msra.mxu0 0
      %401 = vmatprep.subr.bf16.mxu0 0
      %402 = vmatpush1.bf16.msra.mxu0 0
      %403 = vmatprep.subr.bf16.mxu0 0
      %404 = vmatpush1.bf16.msra.mxu0 0
      %405 = vmatprep.subr.bf16.mxu0 0
      %406 = vmatpush1.bf16.msra.mxu0 %v393
      %407 = vmatprep.subr.bf16.mxu0 0
      %408 = vmatpush1.bf16.msra.mxu0 %v380
      %409 = vmatprep.subr.bf16.mxu0 0
      %410 = vmatpush1.bf16.msra.mxu0 %v379
      %411 = vmatprep.subr.bf16.mxu0 0
      %412 = vmatpush2.bf16.msra.mxu0 0
      %413 = vmatprep.subr.bf16.mxu0 0
      %414 = vmatpush2.bf16.msra.mxu0 0
      %415 = vmatprep.subr.bf16.mxu0 0
      %416 = vmatpush2.bf16.msra.mxu0 0
      %417 = vmatprep.subr.bf16.mxu0 0
      %418 = vmatpush2.bf16.msra.mxu0 0
      %419 = vmatprep.subr.bf16.mxu0 0
      %420 = vmatpush2.bf16.msra.mxu0 0
      %421 = vmatprep.subr.bf16.mxu0 0
      %422 = vmatpush2.bf16.msra.mxu0 0
      %423 = vmatprep.subr.bf16.mxu0 0
      %424 = vmatpush2.bf16.msra.mxu0 0
      %425 = vmatprep.subr.bf16.mxu0 0
      %426 = vmatpush2.bf16.msra.mxu0 0
      %427 = vmatprep.mubr.bf16.mxu0 0
      %428 = vmatmul.mubr.bf16.gmra.mxu0 %v386
      %v429 = vpop.f32.mrf.mxu0
      %v430 = vadd.f32 0.0, %v429
      %v431 = vpop.f32.mrf.mxu0
      %v432 = vpop.f32.mrf.mxu0
      %v433 = vadd.f32 0.0, %v432
      %v434 = vpop.f32.mrf.mxu0
      %435 = vmatprep.mubr.bf16.mxu0 0
      %436 = vmatmul.mubr.bf16.gmra.mxu0 %v389
      %v437 = vpop.f32.mrf.mxu0
      %v438 = vadd.f32 0.0, %v437
      %v439 = vpop.f32.mrf.mxu0
      %v440 = vpop.f32.mrf.mxu0
      %v441 = vpop.f32.mrf.mxu0
      %442 = vdwg.mxu0
      %v443 = vld [vmem:[%s331] sm:$0xf]
      %v444 = vld [vmem:[%s331 + $0x4] sm:$0xf]
      %v445 = vld [vmem:[%s331 + $0x8] sm:$0xf]
      %v446 = vld [vmem:[%s331 + $0xc] sm:$0xf]
      %v447 = vld [vmem:[%s331 + $0x10] sm:$0xf]
      %v448 = vld [vmem:[%s336] sm:$0xf]
      %v449 = vld [vmem:[%s336 + $0x4] sm:$0xf]
      %v450 = vld [vmem:[%s336 + $0x8] sm:$0xf]
      %v456 = vunpack.c.l.b16 %v443
      %v457 = vunpack.c.l.b16 %v444
      %v458 = vunpack.c.l.b16 %v445
      %v459 = vunpack.c.l.b16 %v446
      %v460 = vunpack.c.l.b16 %v447
      %v461 = vpack.c.b16 %v457, %v456
      %v462 = vpack.c.b16 %v459, %v458
      %v463 = vpack.c.b16 %v460, %v460
      %v467 = vunpack.c.l.b16 %v448
      %v468 = vunpack.c.l.b16 %v449
      %v469 = vunpack.c.l.b16 %v450
      %v470 = vpack.c.b16 %v468, %v467
      %v471 = vpack.c.b16 %v469, %v469
      %vm473 = vcmask 195584
      %v475 = vsel %vm473, %v461, 0
      %v478 = vsel %vm473, %v462, 0
      %v481 = vsel %vm473, %v463, 0
      %v484 = vsel %vm391, %v471, 0
      %486 = vmatprep.subr.bf16.mxu0 0
      %487 = vmatpush1.bf16.msra.mxu0 0
      %488 = vmatprep.subr.bf16.mxu0 0
      %489 = vmatpush1.bf16.msra.mxu0 0
      %490 = vmatprep.subr.bf16.mxu0 0
      %491 = vmatpush1.bf16.msra.mxu0 0
      %492 = vmatprep.subr.bf16.mxu0 0
      %493 = vmatpush1.bf16.msra.mxu0 0
      %494 = vmatprep.subr.bf16.mxu0 0
      %495 = vmatpush1.bf16.msra.mxu0 0
      %496 = vmatprep.subr.bf16.mxu0 0
      %497 = vmatpush1.bf16.msra.mxu0 0
      %498 = vmatprep.subr.bf16.mxu0 0
      %499 = vmatpush1.bf16.msra.mxu0 %v484
      %500 = vmatprep.subr.bf16.mxu0 0
      %501 = vmatpush1.bf16.msra.mxu0 %v470
      %502 = vmatprep.subr.bf16.mxu0 0
      %503 = vmatpush2.bf16.msra.mxu0 0
      %504 = vmatprep.subr.bf16.mxu0 0
      %505 = vmatpush2.bf16.msra.mxu0 0
      %506 = vmatprep.subr.bf16.mxu0 0
      %507 = vmatpush2.bf16.msra.mxu0 0
      %508 = vmatprep.subr.bf16.mxu0 0
      %509 = vmatpush2.bf16.msra.mxu0 0
      %510 = vmatprep.subr.bf16.mxu0 0
      %511 = vmatpush2.bf16.msra.mxu0 0
      %512 = vmatprep.subr.bf16.mxu0 0
      %513 = vmatpush2.bf16.msra.mxu0 0
      %514 = vmatprep.subr.bf16.mxu0 0
      %515 = vmatpush2.bf16.msra.mxu0 0
      %516 = vmatprep.subr.bf16.mxu0 0
      %517 = vmatpush2.bf16.msra.mxu0 0
      %518 = vmatprep.mubr.bf16.mxu0 0
      %519 = vmatmul.mubr.bf16.gmra.mxu0 %v475
      %v520 = vpop.f32.mrf.mxu0
      %v521 = vadd.f32 0.0, %v520
      %v522 = vpop.f32.mrf.mxu0
      %v523 = vpop.f32.mrf.mxu0
      %v524 = vadd.f32 0.0, %v523
      %v525 = vpop.f32.mrf.mxu0
      %526 = vmatprep.mubr.bf16.mxu0 0
      %527 = vmatmul.mubr.bf16.gmra.mxu0 %v478
      %v528 = vpop.f32.mrf.mxu0
      %v529 = vadd.f32 0.0, %v528
      %v530 = vpop.f32.mrf.mxu0
      %v531 = vpop.f32.mrf.mxu0
      %v532 = vadd.f32 0.0, %v531
      %v533 = vpop.f32.mrf.mxu0
      %534 = vmatprep.mubr.bf16.mxu0 0
      %535 = vmatmul.mubr.bf16.gmra.mxu0 %v481
      %v536 = vpop.f32.mrf.mxu0
      %v537 = vadd.f32 0.0, %v536
      %v538 = vpop.f32.mrf.mxu0
      %v539 = vpop.f32.mrf.mxu0
      %v540 = vpop.f32.mrf.mxu0
      %541 = vdwg.mxu0
      %v542 = vld [vmem:[%s4] sm:$0xff]
      %v543 = vld [vmem:[%s4 + $0x8] sm:$0xff]
      %v544 = vld [vmem:[%s4 + $0x10] sm:$0xff]
      %v545 = vadd.f32 %v542, %v430
      %v546 = vadd.f32 %v543, %v433
      %v547 = vadd.f32 %v544, %v438
      %v548 = vmul.f32 %v545, 0.33333334
      %v549 = vmul.f32 %v546, 0.33333334
      %v550 = vmul.f32 %v547, 0.33333334
      %vm551 = vcmask 261120
      %552 = vst.msk [vmem:[%s346] sm:$0xff] %vm551, %v548
      %553 = vst.msk [vmem:[%s346 + $0x8] sm:$0xff] %vm551, %v549
      %554 = vst.msk [vmem:[%s346 + $0x10] sm:$0xff] %vm551, %v550
      %v555 = vld [vmem:[%s5] sm:$0xff]
      %v556 = vld [vmem:[%s5 + $0x8] sm:$0xff]
      %v557 = vld [vmem:[%s5 + $0x10] sm:$0xff]
      %v558 = vld [vmem:[%s5 + $0x18] sm:$0xff]
      %v559 = vld [vmem:[%s5 + $0x20] sm:$0xff]
      %v560 = vadd.f32 %v555, %v521
      %v561 = vadd.f32 %v556, %v524
      %v562 = vadd.f32 %v557, %v529
      %v563 = vadd.f32 %v558, %v532
      %v564 = vadd.f32 %v559, %v537
      %v565 = vmul.f32 %v560, 0.33333334
      %v566 = vmul.f32 %v561, 0.33333334
      %v567 = vmul.f32 %v562, 0.33333334
      %v568 = vmul.f32 %v563, 0.33333334
      %v569 = vmul.f32 %v564, 0.33333334
      %570 = vst.msk [vmem:[%s351] sm:$0xff] %vm551, %v565
      %571 = vst.msk [vmem:[%s351 + $0x8] sm:$0xff] %vm551, %v566
      %572 = vst.msk [vmem:[%s351 + $0x10] sm:$0xff] %vm551, %v567
      %573 = vst.msk [vmem:[%s351 + $0x18] sm:$0xff] %vm551, %v568
      %574 = vst.msk [vmem:[%s351 + $0x20] sm:$0xff] %vm551, %v569
      %p575 = scmp.lt.s32.totalorder %s19, 2
      %s576 = scalar_select %p575, %s19, 2
      %s577 = smul.addr %s576, 3
      %s578 = smul.addr %s577, 8
      %s579 = scalar_lea.vmem %s6, %s578
      %p580 = scmp.lt.s32.totalorder %s19, 2
      %s581 = scalar_select %p580, %s19, 2
      %s582 = smul.addr %s581, 5
      %s583 = smul.addr %s582, 8
      %s584 = scalar_lea.vmem %s7, %s583
      // Predicated region
      $region45: #{lightgcn_forward.7} parent=43 // pred_check
        %p585 = pneg %p183
      $region46: #{lightgcn_forward.7} parent=43 // pred_check_branch
        %587 = sbr.rel (%p585) target = $region48
      $region47: #{lightgcn_forward.7} parent=43 // pred_region
        _
      $region48: #{lightgcn_forward.7} parent=43 // pred_fallthru
        _
      // Predicated region
      $region49: #{lightgcn_forward.7} parent=43 // pred_check
        %p588 = pneg %p209
      $region50: #{lightgcn_forward.7} parent=43 // pred_check_branch
        %590 = sbr.rel (%p588) target = $region52
      $region51: #{lightgcn_forward.7} parent=43 // pred_region
        _
      $region52: #{lightgcn_forward.7} parent=43 // pred_fallthru
        _
    $region44: #{lightgcn_forward.7} parent=5 // pred_fallthru
      _
    %p591 = scmp.le.s32.totalorder 2, %s14
    // Predicated region
    $region53: #{lightgcn_forward.7} parent=5 // pred_check
      %p592 = pneg %p591
    $region54: #{lightgcn_forward.7} parent=5 // pred_check_branch
      %594 = sbr.rel (%p592) target = $region56
    $region55: #{lightgcn_forward.7} parent=5 // pred_region
      %s595 = ssub.s32 %s14, 2
      // Predicated region
      $region57: #{lightgcn_forward.7} parent=55 // pred_check
        %p596 = pneg %p189
      $region58: #{lightgcn_forward.7} parent=55 // pred_check_branch
        %598 = sbr.rel (%p596) target = $region60
      $region59: #{lightgcn_forward.7} parent=55 // pred_region
        %p599 = scmp.lt.s32.totalorder %s20, 2
        %s600 = scalar_select %p599, %s20, 2
        %s601 = smul.addr %s600, 3
        %s602 = smul.addr %s601, 8
        %s603 = scalar_lea.vmem %s6, %s602
      $region60: #{lightgcn_forward.7} parent=55 // pred_fallthru
        _
      // Predicated region
      $region61: #{lightgcn_forward.7} parent=55 // pred_check
        %p604 = pneg %p215
      $region62: #{lightgcn_forward.7} parent=55 // pred_check_branch
        %606 = sbr.rel (%p604) target = $region64
      $region63: #{lightgcn_forward.7} parent=55 // pred_region
        %p607 = scmp.lt.s32.totalorder %s20, 2
        %s608 = scalar_select %p607, %s20, 2
        %s609 = smul.addr %s608, 5
        %s610 = smul.addr %s609, 8
        %s611 = scalar_lea.vmem %s7, %s610
      $region64: #{lightgcn_forward.7} parent=55 // pred_fallthru
        _
    $region56: #{lightgcn_forward.7} parent=5 // pred_fallthru
      _
  $region6: #{lightgcn_forward.7} parent=0 // loop_footer
    %s18 = sadd.s32 1, %s14
  $region7: #{lightgcn_forward.7} parent=0 // loop_footer_branch
    %13 = sbr.rel target = $region3
  $region8: #{lightgcn_forward.7} parent=0 // loop_exit
    _

// kernel: lightgcn_forward.11
$region0: #{lightgcn_forward.11}
  #allocation0 [shape = 'u32[]', space=smem, size = 0x4, offset = 0x4, fixed_abs, tag = 'smem constant byte address 0x4 - core index']
  #allocation1 [shape = 'u32[144,128]{1,0:T(1,128)}', space=vmem, size = 0x12000, scoped, tag = 'internal scratch']
  %s0 = inlined_call_operand.vmem [shape: f32[8,32], index: 0, kind: input, shape index: {}]
  %s1 = inlined_call_operand.vmem [shape: f32[8,32], index: 1, kind: input, shape index: {}]
  %s2 = inlined_call_operand.hbm [shape: f32[1,1], index: 2, kind: output, shape index: {}]
  %s3 = sld [smem:[#allocation0]]
  $region18: #{lightgcn_forward.11} parent=0
    _
  %s5 = ssub.s32 1, %s3
  %s6 = scalar_select 0, %s5, %s3
  $region1: #{lightgcn_forward.11} parent=0
    #allocation2 [shape = 'u8[512]{0}', space=smem, size = 0x200, scoped, tag = 'output window, operand 0, single buffered']
    #allocation3 [shape = 's32[1]{0}', space=sflag, size = 0x4, scoped, tag = 'scoped memory for lightgcn_forward.11']
    %7 = vsyncpa [#allocation3], 0
    // Predicated region
    $region2: #{lightgcn_forward.11} parent=1 // pred_check
      _
    $region3: #{lightgcn_forward.11} parent=1 // pred_check_branch
      %9 = sbr.rel (0) target = $region5
    $region4: #{lightgcn_forward.11} parent=1 // pred_region
      _
    $region5: #{lightgcn_forward.11} parent=1 // pred_fallthru
      _
    // Predicated region
    $region6: #{lightgcn_forward.11} parent=1 // pred_check
      _
    $region7: #{lightgcn_forward.11} parent=1 // pred_check_branch
      %11 = sbr.rel (0) target = $region9
    $region8: #{lightgcn_forward.11} parent=1 // pred_region
      _
    $region9: #{lightgcn_forward.11} parent=1 // pred_fallthru
      _
    %v12 = vld [vmem:[%s0] sm:$0xff]
    %v13 = vld [vmem:[%s1] sm:$0xff]
    %v14 = vmul.f32 %v12, %v13
    %vm15 = vcmask 261120
    %v16 = vsel %vm15, %v14, 0.0
    %17 = vadd.xlane.f32.xlu0 %v16
    %v18 = vpop.xlane.xlu0 %17
    %v19 = vmul.f32 %v18, 5.0
    %v21 = vsel %vm15, %v12, 0
    %v24 = vsel %vm15, %v13, 0
    %26 = vmatprep.subr.mxu0 0.0
    %27 = vmatpush1.xpose.msra.mxu0 0.0
    %28 = vmatprep.subr.mxu0 0.0
    %29 = vmatpush1.xpose.msra.mxu0 0.0
    %30 = vmatprep.subr.mxu0 0.0
    %31 = vmatpush1.xpose.msra.mxu0 0.0
    %32 = vmatprep.subr.mxu0 0.0
    %33 = vmatpush1.xpose.msra.mxu0 0.0
    %34 = vmatprep.subr.mxu0 0.0
    %35 = vmatpush1.xpose.msra.mxu0 0.0
    %36 = vmatprep.subr.mxu0 0.0
    %37 = vmatpush1.xpose.msra.mxu0 0.0
    %38 = vmatprep.subr.mxu0 0.0
    %39 = vmatpush1.xpose.msra.mxu0 0.0
    %40 = vmatprep.subr.mxu0 0.0
    %41 = vmatpush1.xpose.msra.mxu0 0.0
    %42 = vmatprep.subr.mxu0 0.0
    %43 = vmatpush1.xpose.msra.mxu0 0.0
    %44 = vmatprep.subr.mxu0 0.0
    %45 = vmatpush1.xpose.msra.mxu0 0.0
    %46 = vmatprep.subr.mxu0 0.0
    %47 = vmatpush1.xpose.msra.mxu0 0.0
    %48 = vmatprep.subr.mxu0 0.0
    %49 = vmatpush1.xpose.msra.mxu0 0.0
    %50 = vmatprep.subr.mxu0 0.0
    %51 = vmatpush1.xpose.msra.mxu0 0.0
    %52 = vmatprep.subr.mxu0 0.0
    %53 = vmatpush1.xpose.msra.mxu0 0.0
    %54 = vmatprep.subr.mxu0 0.0
    %55 = vmatpush1.xpose.msra.mxu0 0.0
    %56 = vmatprep.subr.mxu0 0.0
    %57 = vmatpush1.xpose.msra.mxu0 %v24
    %58 = vmatprep.subr.mxu0 0.0
    %59 = vmatpush2.xpose.msra.mxu0 0.0
    %60 = vmatprep.subr.mxu0 0.0
    %61 = vmatpush2.xpose.msra.mxu0 0.0
    %62 = vmatprep.subr.mxu0 0.0
    %63 = vmatpush2.xpose.msra.mxu0 0.0
    %64 = vmatprep.subr.mxu0 0.0
    %65 = vmatpush2.xpose.msra.mxu0 0.0
    %66 = vmatprep.subr.mxu0 0.0
    %67 = vmatpush2.xpose.msra.mxu0 0.0
    %68 = vmatprep.subr.mxu0 0.0
    %69 = vmatpush2.xpose.msra.mxu0 0.0
    %70 = vmatprep.subr.mxu0 0.0
    %71 = vmatpush2.xpose.msra.mxu0 0.0
    %72 = vmatprep.subr.mxu0 0.0
    %73 = vmatpush2.xpose.msra.mxu0 0.0
    %74 = vmatprep.subr.mxu0 0.0
    %75 = vmatpush2.xpose.msra.mxu0 0.0
    %76 = vmatprep.subr.mxu0 0.0
    %77 = vmatpush2.xpose.msra.mxu0 0.0
    %78 = vmatprep.subr.mxu0 0.0
    %79 = vmatpush2.xpose.msra.mxu0 0.0
    %80 = vmatprep.subr.mxu0 0.0
    %81 = vmatpush2.xpose.msra.mxu0 0.0
    %82 = vmatprep.subr.mxu0 0.0
    %83 = vmatpush2.xpose.msra.mxu0 0.0
    %84 = vmatprep.subr.mxu0 0.0
    %85 = vmatpush2.xpose.msra.mxu0 0.0
    %86 = vmatprep.subr.mxu0 0.0
    %87 = vmatpush2.xpose.msra.mxu0 0.0
    %88 = vmatprep.subr.mxu0 0.0
    %89 = vmatpush2.xpose.msra.mxu0 0.0
    %90 = vmatprep.mubr.f32.mxu0 0.0
    %91 = vmatmul.mubr.f32.gmra.mxu0 %v21
    %v92 = vpop.f32.mrf.mxu0
    %v93 = vadd.f32 0.0, %v92
    %v94 = vpop.f32.mrf.mxu0
    %95 = vdwg.mxu0
    %v96 = vmul.f32 %v93, 5.0
    %vm97 = vcmask 64512
    %v98 = vsel %vm97, %v96, -inf
    %99 = vmax.xlane.f32.xlu0 %v98
    %v100 = vpop.xlane.xlu0 %99
    %v101 = vsub.f32 %v96, %v100
    %v102 = vmul.f32 %v101, 1.442695
    %v103 = vpow.pop %v102
    %v104 = vsel %vm97, %v103, 0.0
    %105 = vadd.xlane.f32.xlu0 %v104
    %v106 = vpop.xlane.xlu0 %105
    %v107 = vlog2.pop %v106
    %v108 = vmul.f32 %v107, 0.6931472
    %v109 = vadd.f32 %v100, %v108
    %v110 = vsub.f32 %v109, %v19
    %vm111 = vcmask 7168
    %v112 = vsel %vm111, %v110, 0.0
    %113 = vadd.xlane.f32.xlu0 %v112
    %v114 = vpop.xlane.xlu0 %113
    %v115 = vrot.slane %v114, 4
    %v116 = vadd.f32 %v114, %v115
    %v117 = vrot.slane %v116, 2
    %v118 = vadd.f32 %v116, %v117
    %v119 = vrot.slane %v118, 1
    %v120 = vadd.f32 %v118, %v119
    %s121 = vtos %v120
    %v122 = vrcp.pop 8.0
    %s123 = vtos %v122
    %s124 = smul.f32 %s121, %s123
    %s125 = scalar_lea.smem [#allocation2], 0
    %126 = sst [smem:[%s125]] %s124
    // Predicated region
    $region10: #{lightgcn_forward.11} parent=1 // pred_check
      _
    $region11: #{lightgcn_forward.11} parent=1 // pred_check_branch
      %128 = sbr.rel (0) target = $region13
    $region12: #{lightgcn_forward.11} parent=1 // pred_region
      %s130 = ssub.s32 16, 16
      %131 = vsyncadd [#allocation3], %s130
      %134 = dma.smem_to_hbm [#allocation2], 16, %s2, [#allocation3]
    $region13: #{lightgcn_forward.11} parent=1 // pred_fallthru
      _
    // Predicated region
    $region14: #{lightgcn_forward.11} parent=1 // pred_check
      _
    $region15: #{lightgcn_forward.11} parent=1 // pred_check_branch
      %136 = sbr.rel (0) target = $region17
    $region16: #{lightgcn_forward.11} parent=1 // pred_region
      %137 = dma.done [#allocation3], 16
    $region17: #{lightgcn_forward.11} parent=1 // pred_fallthru
      _
    %138 = sfence
    %139 = vsyncpa [#allocation3], 1

// kernel: lightgcn_forward.9
$region0: #{lightgcn_forward.9}
  #allocation0 [shape = 'u32[]', space=smem, size = 0x4, offset = 0x4, fixed_abs, tag = 'smem constant byte address 0x4 - core index']
  #allocation1 [shape = 'u32[144,128]{1,0:T(1,128)}', space=vmem, size = 0x12000, scoped, tag = 'internal scratch']
  %s0 = inlined_call_operand.vmem [shape: f32[3,8,32], index: 0, kind: input, shape index: {}]
  %s1 = inlined_call_operand.vmem [shape: f32[3,8,32], index: 1, kind: input, shape index: {}]
  %s2 = inlined_call_operand.vmem [shape: f32[3,8,32], index: 2, kind: input, shape index: {}]
  %s3 = inlined_call_operand.hbm [shape: f32[1,1], index: 3, kind: output, shape index: {0}]
  %s4 = inlined_call_operand.hbm [shape: f32[1,1], index: 4, kind: output, shape index: {1}]
  %5 = xla_tuple %s3, %s4
  %s6 = sld [smem:[#allocation0]]
  $region30: #{lightgcn_forward.9} parent=0
    _
  %s8 = ssub.s32 1, %s6
  %s9 = scalar_select 0, %s8, %s6
  $region1: #{lightgcn_forward.9} parent=0
    #allocation2 [shape = 'u8[512]{0}', space=smem, size = 0x200, scoped, tag = 'output window, operand 0, single buffered']
    #allocation3 [shape = 's32[1]{0}', space=sflag, size = 0x4, scoped, tag = 'scoped memory for lightgcn_forward.9']
    #allocation4 [shape = 'u8[512]{0}', space=smem, size = 0x200, scoped, tag = 'output window, operand 1, single buffered']
    #allocation5 [shape = 's32[1]{0}', space=sflag, size = 0x4, scoped, tag = 'scoped memory for lightgcn_forward.9']
    %10 = vsyncpa [#allocation3], 0
    %11 = vsyncpa [#allocation5], 0
    // Predicated region
    $region2: #{lightgcn_forward.9} parent=1 // pred_check
      _
    $region3: #{lightgcn_forward.9} parent=1 // pred_check_branch
      %13 = sbr.rel (0) target = $region5
    $region4: #{lightgcn_forward.9} parent=1 // pred_region
      _
    $region5: #{lightgcn_forward.9} parent=1 // pred_fallthru
      _
    // Predicated region
    $region6: #{lightgcn_forward.9} parent=1 // pred_check
      _
    $region7: #{lightgcn_forward.9} parent=1 // pred_check_branch
      %15 = sbr.rel (0) target = $region9
    $region8: #{lightgcn_forward.9} parent=1 // pred_region
      _
    $region9: #{lightgcn_forward.9} parent=1 // pred_fallthru
      _
    // Predicated region
    $region10: #{lightgcn_forward.9} parent=1 // pred_check
      _
    $region11: #{lightgcn_forward.9} parent=1 // pred_check_branch
      %17 = sbr.rel (0) target = $region13
    $region12: #{lightgcn_forward.9} parent=1 // pred_region
      _
    $region13: #{lightgcn_forward.9} parent=1 // pred_fallthru
      _
    %v18 = vld [vmem:[%s0] sm:$0xff]
    %v19 = vld [vmem:[%s0 + $0x8] sm:$0xff]
    %v20 = vld [vmem:[%s0 + $0x10] sm:$0xff]
    %v21 = vld [vmem:[%s1] sm:$0xff]
    %v22 = vld [vmem:[%s1 + $0x8] sm:$0xff]
    %v23 = vld [vmem:[%s1 + $0x10] sm:$0xff]
    %v24 = vld [vmem:[%s2] sm:$0xff]
    %v25 = vld [vmem:[%s2 + $0x8] sm:$0xff]
    %v26 = vld [vmem:[%s2 + $0x10] sm:$0xff]
    %v27 = vsub.f32 %v24, %v21
    %v28 = vsub.f32 %v25, %v22
    %v29 = vsub.f32 %v26, %v23
    %v30 = vmul.f32 %v18, %v27
    %v31 = vmul.f32 %v19, %v28
    %v32 = vmul.f32 %v20, %v29
    %vm33 = vcmask 261120
    %v34 = vsel %vm33, %v30, 0.0
    %35 = vadd.xlane.f32.xlu0 %v34
    %v36 = vpop.xlane.xlu0 %35
    %v37 = vsel %vm33, %v31, 0.0
    %38 = vadd.xlane.f32.xlu0 %v37
    %v39 = vpop.xlane.xlu0 %38
    %v40 = vsel %vm33, %v32, 0.0
    %41 = vadd.xlane.f32.xlu0 %v40
    %v42 = vpop.xlane.xlu0 %41
    %v43 = vmax.f32 %v36, 0.0
    %v44 = vmax.f32 %v39, 0.0
    %v45 = vmax.f32 %v42, 0.0
    %v46 = vand.u32 2147483647, %v36
    %v47 = vand.u32 2147483647, %v39
    %v48 = vand.u32 2147483647, %v42
    %v49 = vsub.f32 0.0, %v46
    %v50 = vsub.f32 0.0, %v47
    %v51 = vsub.f32 0.0, %v48
    %v52 = vmul.f32 %v49, 1.442695
    %v53 = vpow.pop %v52
    %v54 = vmul.f32 %v50, 1.442695
    %v55 = vpow.pop %v54
    %v56 = vmul.f32 %v51, 1.442695
    %v57 = vpow.pop %v56
    %v58 = vadd.f32 %v53, 1.0
    %v59 = vadd.f32 %v55, 1.0
    %v60 = vadd.f32 %v57, 1.0
    %v61 = vlog2.pop %v58
    %v62 = vmul.f32 %v61, 0.6931472
    %v63 = vlog2.pop %v59
    %v64 = vmul.f32 %v63, 0.6931472
    %v65 = vlog2.pop %v60
    %v66 = vmul.f32 %v65, 0.6931472
    %v67 = vadd.f32 %v43, %v62
    %v68 = vadd.f32 %v44, %v64
    %v69 = vadd.f32 %v45, %v66
    %vm70 = vcmask 7168
    %v71 = vsel %vm70, %v67, 0.0
    %v72 = vsel %vm70, %v68, 0.0
    %v73 = vadd.f32 %v71, %v72
    %v74 = vsel %vm70, %v69, 0.0
    %v75 = vadd.f32 %v73, %v74
    %76 = vadd.xlane.f32.xlu0 %v75
    %v77 = vpop.xlane.xlu0 %76
    %v78 = vrot.slane %v77, 4
    %v79 = vadd.f32 %v77, %v78
    %v80 = vrot.slane %v79, 2
    %v81 = vadd.f32 %v79, %v80
    %v82 = vrot.slane %v81, 1
    %v83 = vadd.f32 %v81, %v82
    %s84 = vtos %v83
    %v85 = vrcp.pop 8.0
    %s86 = vtos %v85
    %s87 = smul.f32 %s84, %s86
    %s88 = scalar_lea.smem [#allocation2], 0
    %89 = sst [smem:[%s88]] %s87
    %v90 = vmul.f32 %v18, %v18
    %v91 = vmul.f32 %v19, %v19
    %v92 = vmul.f32 %v20, %v20
    %v93 = vsel %vm33, %v90, 0.0
    %v94 = vsel %vm33, %v91, 0.0
    %v95 = vadd.f32 %v93, %v94
    %v96 = vsel %vm33, %v92, 0.0
    %v97 = vadd.f32 %v95, %v96
    %98 = vadd.xlane.f32.xlu0 %v97
    %v99 = vpop.xlane.xlu0 %98
    %v100 = vrot.slane %v99, 4
    %v101 = vadd.f32 %v99, %v100
    %v102 = vrot.slane %v101, 2
    %v103 = vadd.f32 %v101, %v102
    %v104 = vrot.slane %v103, 1
    %v105 = vadd.f32 %v103, %v104
    %s106 = vtos %v105
    %v107 = vmul.f32 %v21, %v21
    %v108 = vmul.f32 %v22, %v22
    %v109 = vmul.f32 %v23, %v23
    %v110 = vsel %vm33, %v107, 0.0
    %v111 = vsel %vm33, %v108, 0.0
    %v112 = vadd.f32 %v110, %v111
    %v113 = vsel %vm33, %v109, 0.0
    %v114 = vadd.f32 %v112, %v113
    %115 = vadd.xlane.f32.xlu0 %v114
    %v116 = vpop.xlane.xlu0 %115
    %v117 = vrot.slane %v116, 4
    %v118 = vadd.f32 %v116, %v117
    %v119 = vrot.slane %v118, 2
    %v120 = vadd.f32 %v118, %v119
    %v121 = vrot.slane %v120, 1
    %v122 = vadd.f32 %v120, %v121
    %s123 = vtos %v122
    %s124 = sadd.f32 %s106, %s123
    %v125 = vmul.f32 %v24, %v24
    %v126 = vmul.f32 %v25, %v25
    %v127 = vmul.f32 %v26, %v26
    %v128 = vsel %vm33, %v125, 0.0
    %v129 = vsel %vm33, %v126, 0.0
    %v130 = vadd.f32 %v128, %v129
    %v131 = vsel %vm33, %v127, 0.0
    %v132 = vadd.f32 %v130, %v131
    %133 = vadd.xlane.f32.xlu0 %v132
    %v134 = vpop.xlane.xlu0 %133
    %v135 = vrot.slane %v134, 4
    %v136 = vadd.f32 %v134, %v135
    %v137 = vrot.slane %v136, 2
    %v138 = vadd.f32 %v136, %v137
    %v139 = vrot.slane %v138, 1
    %v140 = vadd.f32 %v138, %v139
    %s141 = vtos %v140
    %s142 = sadd.f32 %s124, %s141
    %s143 = smul.f32 %s142, 0.5
    %v144 = vrcp.pop 8.0
    %s145 = vtos %v144
    %s146 = smul.f32 %s143, %s145
    %s147 = scalar_lea.smem [#allocation4], 0
    %148 = sst [smem:[%s147]] %s146
    // Predicated region
    $region14: #{lightgcn_forward.9} parent=1 // pred_check
      _
    $region15: #{lightgcn_forward.9} parent=1 // pred_check_branch
      %150 = sbr.rel (0) target = $region17
    $region16: #{lightgcn_forward.9} parent=1 // pred_region
      %s152 = ssub.s32 16, 16
      %153 = vsyncadd [#allocation3], %s152
      %156 = dma.smem_to_hbm [#allocation2], 16, %s3, [#allocation3]
    $region17: #{lightgcn_forward.9} parent=1 // pred_fallthru
      _
    // Predicated region
    $region18: #{lightgcn_forward.9} parent=1 // pred_check
      _
    $region19: #{lightgcn_forward.9} parent=1 // pred_check_branch
      %158 = sbr.rel (0) target = $region21
    $region20: #{lightgcn_forward.9} parent=1 // pred_region
      %s160 = ssub.s32 16, 16
      %161 = vsyncadd [#allocation5], %s160
      %164 = dma.smem_to_hbm [#allocation4], 16, %s4, [#allocation5]
    $region21: #{lightgcn_forward.9} parent=1 // pred_fallthru
      _
    // Predicated region
    $region22: #{lightgcn_forward.9} parent=1 // pred_check
      _
    $region23: #{lightgcn_forward.9} parent=1 // pred_check_branch
      %166 = sbr.rel (0) target = $region25
    $region24: #{lightgcn_forward.9} parent=1 // pred_region
      %167 = dma.done [#allocation3], 16
    $region25: #{lightgcn_forward.9} parent=1 // pred_fallthru
      _
    // Predicated region
    $region26: #{lightgcn_forward.9} parent=1 // pred_check
      _
    $region27: #{lightgcn_forward.9} parent=1 // pred_check_branch
      %169 = sbr.rel (0) target = $region29
    $region28: #{lightgcn_forward.9} parent=1 // pred_region
      %170 = dma.done [#allocation5], 16
    $region29: #{lightgcn_forward.9} parent=1 // pred_fallthru
      _
    %171 = sfence
    %172 = vsyncpa [#allocation3], 1
    %173 = vsyncpa [#allocation5], 1

</llo_original>
